<compile_context>
chip_gen: v5e
topology: v5e:2x2
jax: 0.10.0
libtpu: 0.0.40
codegen_flags: <defaults>
</compile_context>

<pallas_src>
import jax
import jax.numpy as jnp
from jax import lax
from jax.experimental import pallas as pl
from jax.experimental.pallas import tpu as pltpu


# --------------------------------------------------------------------------
# Pallas kernel: hoisted input projection + fused bidirectional recurrence
# (one block-diagonal matmul + one tanh per step) + fc projection.
# Operates on a (T, block_b, F) batch tile fully resident in VMEM.
# --------------------------------------------------------------------------
def _bilstm_kernel(x_ref,        # (T, Bb, F)   f32, time-major input tile
                   wihc_ref,     # (F, 8H)      matmul dtype, [W_ih_f | W_ih_b], i/f/o cols pre-scaled 0.5
                   whhc_ref,     # (2H, 8H)     matmul dtype, block-diag [W_hh_f ; W_hh_b], pre-scaled
                   bc_ref,       # (1, 8H)      f32, folded biases, pre-scaled
                   wfc_ref,      # (2H, F)      matmul dtype
                   bfc_ref,      # (1, F)       f32
                   emb_ref,      # (T, Bb, 2H)  f32 output (tanh'd LSTM states)
                   rec_ref,      # (T, Bb, F)   f32 output (reconstruction)
                   gx_s):        # (T, Bb, 8H)  f32 scratch: precomputed input pre-gates
    T, Bb, Fd = x_ref.shape
    H2 = whhc_ref.shape[0]           # 2H
    H = H2 // 2
    G = 4 * H                        # gates per direction

    mdt = whhc_ref.dtype             # matmul operand dtype (bf16 by default)
    whh = whhc_ref[...]              # stays resident across the recurrence

    # ---- (1) Hoisted input projection + bias, written once into ONE scratch.
    x2d = x_ref[...].reshape(T * Bb, Fd).astype(mdt)
    gx = jnp.dot(x2d, wihc_ref[...], preferred_element_type=jnp.float32)
    gx = gx + bc_ref[...]
    gx_s[...] = gx.reshape(T, Bb, 2 * G)

    zeros_h = jnp.zeros((Bb, H), jnp.float32)
    zeros_2h = jnp.zeros((Bb, H2), jnp.float32)

    # ---- (2) Interleaved fwd/bwd recurrence: one fused matmul + one 8H tanh
    #          per step (sigmoid via tanh; 0.5 pre-folded into the weights).
    def body(s, carry):
        h_cat, cf, cb = carry
        tb = T - 1 - s
        # fwd pre-gates for time s, bwd pre-gates for time tb (lane-aligned).
        gx_t = jnp.concatenate([gx_s[s, :, 0:G], gx_s[tb, :, G:2 * G]], axis=-1)
        gates = jnp.dot(h_cat.astype(mdt), whh,
                        preferred_element_type=jnp.float32) + gx_t
        t = jnp.tanh(gates)                    # single EUP pass over 8H
        sg = 0.5 * (t + 1.0)                   # sigmoid for i/f/o columns (VPU)
        # PyTorch gate order per direction: i, f, g, o.
        cf_new = sg[:, H:2 * H] * cf + sg[:, 0:H] * t[:, 2 * H:3 * H]
        cb_new = sg[:, 5 * H:6 * H] * cb + sg[:, 4 * H:5 * H] * t[:, 6 * H:7 * H]
        hf = sg[:, 3 * H:4 * H] * jnp.tanh(cf_new)
        hb = sg[:, 7 * H:8 * H] * jnp.tanh(cb_new)
        # Post-LSTM tanh activation, written straight into the emb output tile
        # (no ef/eb scratch, no concat pass); off the recurrence critical path.
        emb_ref[s, :, 0:H] = jnp.tanh(hf)
        emb_ref[tb, :, H:H2] = jnp.tanh(hb)
        return (jnp.concatenate([hf, hb], axis=-1), cf_new, cb_new)

    # Full unroll only when the carries / trip count are small enough not to
    # blow the 64-vreg file; otherwise partial unroll keeps LLO visibility.
    unroll = True if (T <= 32 and Bb * H <= 8 * 1024) else 2
    lax.fori_loop(0, T, body, (zeros_2h, zeros_h, zeros_h), unroll=unroll)

    # ---- (3) fc projection fed directly from the emb output tile. ---------
    ecat = emb_ref[...].reshape(T * Bb, H2).astype(mdt)
    rec = jnp.dot(ecat, wfc_ref[...], preferred_element_type=jnp.float32)
    rec = rec + bfc_ref[...]
    rec_ref[...] = rec.reshape(T, Bb, Fd)


# --------------------------------------------------------------------------
# Wrapper: weight prep (fusion + sigmoid pre-scale + bf16), tiling, pallas_call.
# --------------------------------------------------------------------------
def lstm_imputer_forward(X, mask, params, *, block_b=None,
                         dtype_matmul=jnp.bfloat16):
    """X: (B, T, F) float32; mask unused (matches the PyTorch forward)."""
    del mask  # unused in the reference forward pass
    B, T, Fd = X.shape
    H = params["whh_f"].shape[0]
    G = 4 * H

    if block_b is None:
        block_b = B
        # Sublane-aligned, MXU-feeding block with >=2 grid steps when possible
        # (second v7x TensorCore via dimension_semantics=("parallel",)).
        for cand in (256, 128, 64, 32, 16, 8):
            if B % cand == 0 and B // cand >= 2:
                block_b = cand
                break
    assert B % block_b == 0

    x_tbf = jnp.transpose(X, (1, 0, 2)).astype(jnp.float32)           # (T, B, F)

    # Fold sigmoid(x) = 0.5*(tanh(x/2)+1) into the weights: scale i/f/o
    # columns (PyTorch order i,f,g,o) by 0.5 so the kernel needs ONE tanh.
    scale4 = jnp.concatenate([jnp.full((H,), 0.5, jnp.float32),
                              jnp.full((H,), 0.5, jnp.float32),
                              jnp.ones((H,), jnp.float32),
                              jnp.full((H,), 0.5, jnp.float32)])
    scale8 = jnp.concatenate([scale4, scale4])

    wih_cat = (jnp.concatenate([params["wih_f"], params["wih_b"]], axis=1)
               * scale8[None, :]).astype(dtype_matmul)                 # (F, 8H)
    b_cat = (jnp.concatenate([params["b_f"], params["b_b"]], axis=1)
             * scale8[None, :]).astype(jnp.float32)                    # (1, 8H)
    whh_cat = jnp.zeros((2 * H, 2 * G), jnp.float32)                   # block-diag
    whh_cat = whh_cat.at[:H, :G].set(params["whh_f"] * scale4[None, :])
    whh_cat = whh_cat.at[H:, G:].set(params["whh_b"] * scale4[None, :])
    whh_cat = whh_cat.astype(dtype_matmul)                             # (2H, 8H)
    wfc = params["wfc"].astype(dtype_matmul)                           # (2H, F)
    bfc = params["bfc"].astype(jnp.float32)                            # (1, F)

    rep = lambda b: (0, 0)
    grid_spec = pltpu.PrefetchScalarGridSpec(
        num_scalar_prefetch=0,
        grid=(B // block_b,),
        in_specs=[
            pl.BlockSpec((T, block_b, Fd), lambda b: (0, b, 0)),   # x
            pl.BlockSpec((Fd, 2 * G), rep),                        # wih_cat
            pl.BlockSpec((2 * H, 2 * G), rep),                     # whh_cat
            pl.BlockSpec((1, 2 * G), rep),                         # b_cat
            pl.BlockSpec((2 * H, Fd), rep),                        # wfc
            pl.BlockSpec((1, Fd), rep),                            # bfc
        ],
        out_specs=[
            pl.BlockSpec((T, block_b, 2 * H), lambda b: (0, b, 0)),  # emb
            pl.BlockSpec((T, block_b, Fd), lambda b: (0, b, 0)),     # rec
        ],
        scratch_shapes=[
            pltpu.VMEM((T, block_b, 2 * G), jnp.float32),   # pre-gates (fwd|bwd)
        ],
    )

    # Rough VMEM footprint (pipeline double-buffers the blocks); raise the
    # scoped limit explicitly when the default cap would bind (v7x: 64 MiB).
    wbytes = jnp.dtype(dtype_matmul).itemsize
    bytes_est = (2 * 4 * T * block_b * (Fd + 2 * H + Fd)           # x + outputs
                 + 2 * wbytes * (Fd * 2 * G + 2 * H * 2 * G + 2 * H * Fd)
                 + 2 * 4 * (2 * G + Fd)                            # biases
                 + 4 * T * block_b * 2 * G)                        # gx scratch
    compiler_kwargs = dict(dimension_semantics=("parallel",))
    if bytes_est > 24 * 1024 * 1024:
        compiler_kwargs["vmem_limit_bytes"] = min(int(bytes_est * 1.5),
                                                  64 * 1024 * 1024)

    emb_tb, rec_tb = pl.pallas_call(
        _bilstm_kernel,
        out_shape=(
            jax.ShapeDtypeStruct((T, B, 2 * H), jnp.float32),
            jax.ShapeDtypeStruct((T, B, Fd), jnp.float32),
        ),
        grid_spec=grid_spec,
        compiler_params=pltpu.CompilerParams(**compiler_kwargs),
    )(x_tbf, wih_cat, whh_cat, b_cat, wfc, bfc)

    reconstructed_X = jnp.transpose(rec_tb, (1, 0, 2))   # (B, T, F)
    embedding = jnp.transpose(emb_tb, (1, 0, 2))         # (B, T, 2H)
    return reconstructed_X, embedding


# --------------------------------------------------------------------------
# Pure-JAX reference (lax.scan) for correctness checking
# --------------------------------------------------------------------------
def _reference_forward(X, params):
    B, T, Fd = X.shape
    H = params["whh_f"].shape[0]
    x = jnp.transpose(X, (1, 0, 2))  # (T, B, F)

    def make_step(wih, whh, b):
        def step(carry, x_t):
            h, c = carry
            g = x_t @ wih + h @ whh + b
            i = jax.nn.sigmoid(g[:, :H])
            f = jax.nn.sigmoid(g[:, H:2 * H])
            gg = jnp.tanh(g[:, 2 * H:3 * H])
            o = jax.nn.sigmoid(g[:, 3 * H:])
            c = f * c + i * gg
            h = o * jnp.tanh(c)
            return (h, c), h
        return step

    h0 = jnp.zeros((B, H), jnp.float32)
    c0 = jnp.zeros((B, H), jnp.float32)
    _, hs_f = lax.scan(make_step(params["wih_f"], params["whh_f"], params["b_f"]),
                       (h0, c0), x)
    _, hs_b = lax.scan(make_step(params["wih_b"], params["whh_b"], params["b_b"]),
                       (h0, c0), x[::-1])
    hs_b = hs_b[::-1]
    out = jnp.tanh(jnp.concatenate([hs_f, hs_b], axis=-1))     # (T, B, 2H)
    rec = out.reshape(T * B, 2 * H) @ params["wfc"] + params["bfc"]
    rec = rec.reshape(T, B, Fd)
    return jnp.transpose(rec, (1, 0, 2)), jnp.transpose(out, (1, 0, 2))


# --------------------------------------------------------------------------
# Deterministic parameter construction (shapes per nn.LSTM / nn.Linear init)
# --------------------------------------------------------------------------
def make_params(key, feat_dim, hidden_size):
    Fd, H = feat_dim, hidden_size
    k = 1.0 / jnp.sqrt(jnp.float32(H))
    keys = jax.random.split(key, 12)
    u = lambda kk, shape: jax.random.uniform(kk, shape, jnp.float32, -k, k)

    # PyTorch stores W_ih: (4H, F), W_hh: (4H, H); we pass the transposes.
    wih_f = u(keys[0], (Fd, 4 * H))
    whh_f = u(keys[1], (H, 4 * H))
    b_f = (u(keys[2], (1, 4 * H)) + u(keys[3], (1, 4 * H)))   # b_ih + b_hh
    wih_b = u(keys[4], (Fd, 4 * H))
    whh_b = u(keys[5], (H, 4 * H))
    b_b = (u(keys[6], (1, 4 * H)) + u(keys[7], (1, 4 * H)))
    kfc = 1.0 / jnp.sqrt(jnp.float32(2 * H))
    wfc = jax.random.uniform(keys[8], (2 * H, Fd), jnp.float32, -kfc, kfc)
    bfc = jax.random.uniform(keys[9], (1, Fd), jnp.float32, -kfc, kfc)
    return {
        "wih_f": wih_f, "whh_f": whh_f, "b_f": b_f,
        "wih_b": wih_b, "whh_b": whh_b, "b_b": b_b,
        "wfc": wfc, "bfc": bfc,
    }


if __name__ == "__main__":
    B, T, FEAT, HID = 2, 8, 16, 32          # batch, max_len, feat_dim, hidden_size
    key = jax.random.PRNGKey(0)
    k_p, k_x, k_m = jax.random.split(key, 3)

    params = make_params(k_p, FEAT, HID)
    X = jax.random.normal(k_x, (B, T, FEAT), jnp.float32)
    mask = (jax.random.uniform(k_m, (B, T, FEAT)) > 0.2).astype(jnp.float32)

    rec_gold, emb_gold = _reference_forward(X, params)

    # Exact-math path (f32 matmul operands): tight structural check.
    rec32, emb32 = jax.block_until_ready(
        lstm_imputer_forward(X, mask, params, dtype_matmul=jnp.float32))
    assert rec32.shape == (B, T, FEAT) and emb32.shape == (B, T, 2 * HID)
    assert jnp.allclose(rec32, rec_gold, rtol=1e-4, atol=1e-4), \
        float(jnp.max(jnp.abs(rec32 - rec_gold)))
    assert jnp.allclose(emb32, emb_gold, rtol=1e-4, atol=1e-4), \
        float(jnp.max(jnp.abs(emb32 - emb_gold)))

    # Default perf path (bf16 MXU operands, f32 accumulate / f32 state).
    rec, emb = jax.block_until_ready(lstm_imputer_forward(X, mask, params))
    assert rec.shape == (B, T, FEAT) and emb.shape == (B, T, 2 * HID)
    assert jnp.allclose(rec, rec_gold, rtol=2e-2, atol=2e-2), \
        float(jnp.max(jnp.abs(rec - rec_gold)))
    assert jnp.allclose(emb, emb_gold, rtol=2e-2, atol=2e-2), \
        float(jnp.max(jnp.abs(emb - emb_gold)))

    print("KERNEL_OK")
</pallas_src>

<mosaic_0001>
module attributes {stable_mosaic.version = 11 : i64} {
  func.func @_bilstm_kernel(%arg0: i32, %arg1: memref<8x2x16xf32, #tpu.memory_space<vmem>>, %arg2: memref<16x256xf32, #tpu.memory_space<vmem>>, %arg3: memref<64x256xf32, #tpu.memory_space<vmem>>, %arg4: memref<1x256xf32, #tpu.memory_space<vmem>>, %arg5: memref<64x16xf32, #tpu.memory_space<vmem>>, %arg6: memref<1x16xf32, #tpu.memory_space<vmem>>, %arg7: memref<8x2x64xf32, #tpu.memory_space<vmem>>, %arg8: memref<8x2x16xf32, #tpu.memory_space<vmem>>, %arg9: memref<8x2x256xf32, #tpu.memory_space<vmem>>) attributes {dimension_semantics = [#tpu.dimension_semantics<parallel>], iteration_bounds = array<i64: 1>, scalar_prefetch = 0 : i64, scratch_operands = 1 : i64, tpu.core_type = #tpu.core_type<tc>, window_params = [{transform_indices = @transform_0, window_bounds = array<i64: 8, 2, 16>}, {pipeline_mode = #tpu.pipeline_mode<synchronous>, transform_indices = @transform_1, window_bounds = array<i64: 16, 256>}, {pipeline_mode = #tpu.pipeline_mode<synchronous>, transform_indices = @transform_2, window_bounds = array<i64: 64, 256>}, {pipeline_mode = #tpu.pipeline_mode<synchronous>, transform_indices = @transform_3, window_bounds = array<i64: 1, 256>}, {pipeline_mode = #tpu.pipeline_mode<synchronous>, transform_indices = @transform_4, window_bounds = array<i64: 64, 16>}, {pipeline_mode = #tpu.pipeline_mode<synchronous>, transform_indices = @transform_5, window_bounds = array<i64: 1, 16>}, {transform_indices = @transform_6, window_bounds = array<i64: 8, 2, 64>}, {transform_indices = @transform_7, window_bounds = array<i64: 8, 2, 16>}]} {
    %c0 = arith.constant 0 : index
    %c0_0 = arith.constant 0 : index
    %0 = vector.load %arg3[%c0, %c0_0] : memref<64x256xf32, #tpu.memory_space<vmem>>, vector<64x256xf32>
    %c0_1 = arith.constant 0 : index
    %c0_2 = arith.constant 0 : index
    %c0_3 = arith.constant 0 : index
    %1 = vector.load %arg1[%c0_1, %c0_2, %c0_3] : memref<8x2x16xf32, #tpu.memory_space<vmem>>, vector<8x2x16xf32>
    %2 = vector.shape_cast %1 : vector<8x2x16xf32> to vector<16x16xf32>
    %c0_4 = arith.constant 0 : index
    %c0_5 = arith.constant 0 : index
    %3 = vector.load %arg2[%c0_4, %c0_5] : memref<16x256xf32, #tpu.memory_space<vmem>>, vector<16x256xf32>
    %cst = arith.constant dense<0.000000e+00> : vector<16x256xf32>
    %4 = tpu.matmul %2, %3, %cst {dimension_numbers = #tpu.dot_dimension_numbers<[1], [0], [0], [1], [0, 0, 1, 1], [], []>} : vector<16x16xf32>, vector<16x256xf32>, vector<16x256xf32> -> vector<16x256xf32>
    %c0_6 = arith.constant 0 : index
    %c0_7 = arith.constant 0 : index
    %5 = vector.load %arg4[%c0_6, %c0_7] : memref<1x256xf32, #tpu.memory_space<vmem>>, vector<1x256xf32>
    %6 = vector.broadcast %5 : vector<1x256xf32> to vector<16x256xf32>
    %7 = arith.addf %4, %6 : vector<16x256xf32>
    %8 = vector.shape_cast %7 : vector<16x256xf32> to vector<8x2x256xf32>
    %c0_8 = arith.constant 0 : index
    %c0_9 = arith.constant 0 : index
    %c0_10 = arith.constant 0 : index
    %9 = vector.load %arg9[%c0_8, %c0_9, %c0_10] : memref<8x2x256xf32, #tpu.memory_space<vmem>>, vector<8x2x256xf32>
    tpu.vector_store %arg9[%c0_8, %c0_9, %c0_10], %8 {strides = array<i32>} : memref<8x2x256xf32, #tpu.memory_space<vmem>>, vector<8x2x256xf32>,
    %cst_11 = arith.constant 0.000000e+00 : f32
    %10 = vector.broadcast %cst_11 : f32 to vector<2x32xf32>
    %cst_12 = arith.constant 0.000000e+00 : f32
    %11 = vector.broadcast %cst_12 : f32 to vector<2x64xf32>
    %c0_i32 = arith.constant 0 : i32
    %c7_i32 = arith.constant 7 : i32
    %12 = arith.subi %c7_i32, %c0_i32 : i32
    %13 = arith.index_cast %c0_i32 : i32 to index
    %c0_13 = arith.constant 0 : index
    %c0_14 = arith.constant 0 : index
    %14 = vector.load %arg9[%13, %c0_13, %c0_14] : memref<8x2x256xf32, #tpu.memory_space<vmem>>, vector<1x2x128xf32>
    %15 = vector.shape_cast %14 : vector<1x2x128xf32> to vector<2x128xf32>
    %16 = arith.index_cast %12 : i32 to index
    %c0_15 = arith.constant 0 : index
    %c128 = arith.constant 128 : index
    %17 = vector.load %arg9[%16, %c0_15, %c128] : memref<8x2x256xf32, #tpu.memory_space<vmem>>, vector<1x2x128xf32>
    %18 = vector.shape_cast %17 : vector<1x2x128xf32> to vector<2x128xf32>
    %19 = tpu.concatenate %15, %18 in 1 : vector<2x128xf32>, vector<2x128xf32> -> vector<2x256xf32>
    %cst_16 = arith.constant dense<0.000000e+00> : vector<2x256xf32>
    %20 = tpu.matmul %11, %0, %cst_16 {dimension_numbers = #tpu.dot_dimension_numbers<[1], [0], [0], [1], [0, 0, 1, 1], [], []>} : vector<2x64xf32>, vector<64x256xf32>, vector<2x256xf32> -> vector<2x256xf32>
    %21 = arith.addf %20, %19 : vector<2x256xf32>
    %22 = math.tanh %21 : vector<2x256xf32>
    %cst_17 = arith.constant 1.000000e+00 : f32
    %23 = vector.broadcast %cst_17 : f32 to vector<2x256xf32>
    %24 = arith.addf %22, %23 : vector<2x256xf32>
    %cst_18 = arith.constant 5.000000e-01 : f32
    %25 = vector.broadcast %cst_18 : f32 to vector<2x256xf32>
    %26 = arith.mulf %25, %24 : vector<2x256xf32>
    %27 = vector.extract_strided_slice %26 {offsets = [0, 32], sizes = [2, 32], strides = [1, 1]} : vector<2x256xf32> to vector<2x32xf32>
    %28 = arith.mulf %27, %10 : vector<2x32xf32>
    %29 = vector.extract_strided_slice %26 {offsets = [0, 0], sizes = [2, 32], strides = [1, 1]} : vector<2x256xf32> to vector<2x32xf32>
    %30 = vector.extract_strided_slice %22 {offsets = [0, 64], sizes = [2, 32], strides = [1, 1]} : vector<2x256xf32> to vector<2x32xf32>
    %31 = arith.mulf %29, %30 : vector<2x32xf32>
    %32 = arith.addf %28, %31 : vector<2x32xf32>
    %33 = vector.extract_strided_slice %26 {offsets = [0, 160], sizes = [2, 32], strides = [1, 1]} : vector<2x256xf32> to vector<2x32xf32>
    %34 = arith.mulf %33, %10 : vector<2x32xf32>
    %35 = vector.extract_strided_slice %26 {offsets = [0, 128], sizes = [2, 32], strides = [1, 1]} : vector<2x256xf32> to vector<2x32xf32>
    %36 = vector.extract_strided_slice %22 {offsets = [0, 192], sizes = [2, 32], strides = [1, 1]} : vector<2x256xf32> to vector<2x32xf32>
    %37 = arith.mulf %35, %36 : vector<2x32xf32>
    %38 = arith.addf %34, %37 : vector<2x32xf32>
    %39 = vector.extract_strided_slice %26 {offsets = [0, 96], sizes = [2, 32], strides = [1, 1]} : vector<2x256xf32> to vector<2x32xf32>
    %40 = math.tanh %32 : vector<2x32xf32>
    %41 = arith.mulf %39, %40 : vector<2x32xf32>
    %42 = vector.extract_strided_slice %26 {offsets = [0, 224], sizes = [2, 32], strides = [1, 1]} : vector<2x256xf32> to vector<2x32xf32>
    %43 = math.tanh %38 : vector<2x32xf32>
    %44 = arith.mulf %42, %43 : vector<2x32xf32>
    %45 = math.tanh %41 : vector<2x32xf32>
    %46 = arith.index_cast %c0_i32 : i32 to index
    %c0_19 = arith.constant 0 : index
    %c0_20 = arith.constant 0 : index
    %47 = vector.load %arg7[%46, %c0_19, %c0_20] : memref<8x2x64xf32, #tpu.memory_space<vmem>>, vector<1x2x32xf32>
    %48 = vector.shape_cast %47 : vector<1x2x32xf32> to vector<2x32xf32>
    %49 = vector.shape_cast %45 : vector<2x32xf32> to vector<1x2x32xf32>
    tpu.vector_store %arg7[%46, %c0_19, %c0_20], %49 {strides = array<i32>} : memref<8x2x64xf32, #tpu.memory_space<vmem>>, vector<1x2x32xf32>,
    %50 = math.tanh %44 : vector<2x32xf32>
    %51 = arith.index_cast %12 : i32 to index
    %c0_21 = arith.constant 0 : index
    %c32 = arith.constant 32 : index
    %52 = vector.load %arg7[%51, %c0_21, %c32] : memref<8x2x64xf32, #tpu.memory_space<vmem>>, vector<1x2x32xf32>
    %53 = vector.shape_cast %52 : vector<1x2x32xf32> to vector<2x32xf32>
    %54 = vector.shape_cast %50 : vector<2x32xf32> to vector<1x2x32xf32>
    tpu.vector_store %arg7[%51, %c0_21, %c32], %54 {strides = array<i32>} : memref<8x2x64xf32, #tpu.memory_space<vmem>>, vector<1x2x32xf32>,
    %55 = tpu.concatenate %41, %44 in 1 : vector<2x32xf32>, vector<2x32xf32> -> vector<2x64xf32>
    %c1_i32 = arith.constant 1 : i32
    %c7_i32_22 = arith.constant 7 : i32
    %56 = arith.subi %c7_i32_22, %c1_i32 : i32
    %57 = arith.index_cast %c1_i32 : i32 to index
    %c0_23 = arith.constant 0 : index
    %c0_24 = arith.constant 0 : index
    %58 = vector.load %arg9[%57, %c0_23, %c0_24] : memref<8x2x256xf32, #tpu.memory_space<vmem>>, vector<1x2x128xf32>
    %59 = vector.shape_cast %58 : vector<1x2x128xf32> to vector<2x128xf32>
    %60 = arith.index_cast %56 : i32 to index
    %c0_25 = arith.constant 0 : index
    %c128_26 = arith.constant 128 : index
    %61 = vector.load %arg9[%60, %c0_25, %c128_26] : memref<8x2x256xf32, #tpu.memory_space<vmem>>, vector<1x2x128xf32>
    %62 = vector.shape_cast %61 : vector<1x2x128xf32> to vector<2x128xf32>
    %63 = tpu.concatenate %59, %62 in 1 : vector<2x128xf32>, vector<2x128xf32> -> vector<2x256xf32>
    %cst_27 = arith.constant dense<0.000000e+00> : vector<2x256xf32>
    %64 = tpu.matmul %55, %0, %cst_27 {dimension_numbers = #tpu.dot_dimension_numbers<[1], [0], [0], [1], [0, 0, 1, 1], [], []>} : vector<2x64xf32>, vector<64x256xf32>, vector<2x256xf32> -> vector<2x256xf32>
    %65 = arith.addf %64, %63 : vector<2x256xf32>
    %66 = math.tanh %65 : vector<2x256xf32>
    %cst_28 = arith.constant 1.000000e+00 : f32
    %67 = vector.broadcast %cst_28 : f32 to vector<2x256xf32>
    %68 = arith.addf %66, %67 : vector<2x256xf32>
    %cst_29 = arith.constant 5.000000e-01 : f32
    %69 = vector.broadcast %cst_29 : f32 to vector<2x256xf32>
    %70 = arith.mulf %69, %68 : vector<2x256xf32>
    %71 = vector.extract_strided_slice %70 {offsets = [0, 32], sizes = [2, 32], strides = [1, 1]} : vector<2x256xf32> to vector<2x32xf32>
    %72 = arith.mulf %71, %32 : vector<2x32xf32>
    %73 = vector.extract_strided_slice %70 {offsets = [0, 0], sizes = [2, 32], strides = [1, 1]} : vector<2x256xf32> to vector<2x32xf32>
    %74 = vector.extract_strided_slice %66 {offsets = [0, 64], sizes = [2, 32], strides = [1, 1]} : vector<2x256xf32> to vector<2x32xf32>
    %75 = arith.mulf %73, %74 : vector<2x32xf32>
    %76 = arith.addf %72, %75 : vector<2x32xf32>
    %77 = vector.extract_strided_slice %70 {offsets = [0, 160], sizes = [2, 32], strides = [1, 1]} : vector<2x256xf32> to vector<2x32xf32>
    %78 = arith.mulf %77, %38 : vector<2x32xf32>
    %79 = vector.extract_strided_slice %70 {offsets = [0, 128], sizes = [2, 32], strides = [1, 1]} : vector<2x256xf32> to vector<2x32xf32>
    %80 = vector.extract_strided_slice %66 {offsets = [0, 192], sizes = [2, 32], strides = [1, 1]} : vector<2x256xf32> to vector<2x32xf32>
    %81 = arith.mulf %79, %80 : vector<2x32xf32>
    %82 = arith.addf %78, %81 : vector<2x32xf32>
    %83 = vector.extract_strided_slice %70 {offsets = [0, 96], sizes = [2, 32], strides = [1, 1]} : vector<2x256xf32> to vector<2x32xf32>
    %84 = math.tanh %76 : vector<2x32xf32>
    %85 = arith.mulf %83, %84 : vector<2x32xf32>
    %86 = vector.extract_strided_slice %70 {offsets = [0, 224], sizes = [2, 32], strides = [1, 1]} : vector<2x256xf32> to vector<2x32xf32>
    %87 = math.tanh %82 : vector<2x32xf32>
    %88 = arith.mulf %86, %87 : vector<2x32xf32>
    %89 = math.tanh %85 : vector<2x32xf32>
    %90 = arith.index_cast %c1_i32 : i32 to index
    %c0_30 = arith.constant 0 : index
    %c0_31 = arith.constant 0 : index
    %91 = vector.load %arg7[%90, %c0_30, %c0_31] : memref<8x2x64xf32, #tpu.memory_space<vmem>>, vector<1x2x32xf32>
    %92 = vector.shape_cast %91 : vector<1x2x32xf32> to vector<2x32xf32>
    %93 = vector.shape_cast %89 : vector<2x32xf32> to vector<1x2x32xf32>
    tpu.vector_store %arg7[%90, %c0_30, %c0_31], %93 {strides = array<i32>} : memref<8x2x64xf32, #tpu.memory_space<vmem>>, vector<1x2x32xf32>,
    %94 = math.tanh %88 : vector<2x32xf32>
    %95 = arith.index_cast %56 : i32 to index
    %c0_32 = arith.constant 0 : index
    %c32_33 = arith.constant 32 : index
    %96 = vector.load %arg7[%95, %c0_32, %c32_33] : memref<8x2x64xf32, #tpu.memory_space<vmem>>, vector<1x2x32xf32>
    %97 = vector.shape_cast %96 : vector<1x2x32xf32> to vector<2x32xf32>
    %98 = vector.shape_cast %94 : vector<2x32xf32> to vector<1x2x32xf32>
    tpu.vector_store %arg7[%95, %c0_32, %c32_33], %98 {strides = array<i32>} : memref<8x2x64xf32, #tpu.memory_space<vmem>>, vector<1x2x32xf32>,
    %99 = tpu.concatenate %85, %88 in 1 : vector<2x32xf32>, vector<2x32xf32> -> vector<2x64xf32>
    %c2_i32 = arith.constant 2 : i32
    %c7_i32_34 = arith.constant 7 : i32
    %100 = arith.subi %c7_i32_34, %c2_i32 : i32
    %101 = arith.index_cast %c2_i32 : i32 to index
    %c0_35 = arith.constant 0 : index
    %c0_36 = arith.constant 0 : index
    %102 = vector.load %arg9[%101, %c0_35, %c0_36] : memref<8x2x256xf32, #tpu.memory_space<vmem>>, vector<1x2x128xf32>
    %103 = vector.shape_cast %102 : vector<1x2x128xf32> to vector<2x128xf32>
    %104 = arith.index_cast %100 : i32 to index
    %c0_37 = arith.constant 0 : index
    %c128_38 = arith.constant 128 : index
    %105 = vector.load %arg9[%104, %c0_37, %c128_38] : memref<8x2x256xf32, #tpu.memory_space<vmem>>, vector<1x2x128xf32>
    %106 = vector.shape_cast %105 : vector<1x2x128xf32> to vector<2x128xf32>
    %107 = tpu.concatenate %103, %106 in 1 : vector<2x128xf32>, vector<2x128xf32> -> vector<2x256xf32>
    %cst_39 = arith.constant dense<0.000000e+00> : vector<2x256xf32>
    %108 = tpu.matmul %99, %0, %cst_39 {dimension_numbers = #tpu.dot_dimension_numbers<[1], [0], [0], [1], [0, 0, 1, 1], [], []>} : vector<2x64xf32>, vector<64x256xf32>, vector<2x256xf32> -> vector<2x256xf32>
    %109 = arith.addf %108, %107 : vector<2x256xf32>
    %110 = math.tanh %109 : vector<2x256xf32>
    %cst_40 = arith.constant 1.000000e+00 : f32
    %111 = vector.broadcast %cst_40 : f32 to vector<2x256xf32>
    %112 = arith.addf %110, %111 : vector<2x256xf32>
    %cst_41 = arith.constant 5.000000e-01 : f32
    %113 = vector.broadcast %cst_41 : f32 to vector<2x256xf32>
    %114 = arith.mulf %113, %112 : vector<2x256xf32>
    %115 = vector.extract_strided_slice %114 {offsets = [0, 32], sizes = [2, 32], strides = [1, 1]} : vector<2x256xf32> to vector<2x32xf32>
    %116 = arith.mulf %115, %76 : vector<2x32xf32>
    %117 = vector.extract_strided_slice %114 {offsets = [0, 0], sizes = [2, 32], strides = [1, 1]} : vector<2x256xf32> to vector<2x32xf32>
    %118 = vector.extract_strided_slice %110 {offsets = [0, 64], sizes = [2, 32], strides = [1, 1]} : vector<2x256xf32> to vector<2x32xf32>
    %119 = arith.mulf %117, %118 : vector<2x32xf32>
    %120 = arith.addf %116, %119 : vector<2x32xf32>
    %121 = vector.extract_strided_slice %114 {offsets = [0, 160], sizes = [2, 32], strides = [1, 1]} : vector<2x256xf32> to vector<2x32xf32>
    %122 = arith.mulf %121, %82 : vector<2x32xf32>
    %123 = vector.extract_strided_slice %114 {offsets = [0, 128], sizes = [2, 32], strides = [1, 1]} : vector<2x256xf32> to vector<2x32xf32>
    %124 = vector.extract_strided_slice %110 {offsets = [0, 192], sizes = [2, 32], strides = [1, 1]} : vector<2x256xf32> to vector<2x32xf32>
    %125 = arith.mulf %123, %124 : vector<2x32xf32>
    %126 = arith.addf %122, %125 : vector<2x32xf32>
    %127 = vector.extract_strided_slice %114 {offsets = [0, 96], sizes = [2, 32], strides = [1, 1]} : vector<2x256xf32> to vector<2x32xf32>
    %128 = math.tanh %120 : vector<2x32xf32>
    %129 = arith.mulf %127, %128 : vector<2x32xf32>
    %130 = vector.extract_strided_slice %114 {offsets = [0, 224], sizes = [2, 32], strides = [1, 1]} : vector<2x256xf32> to vector<2x32xf32>
    %131 = math.tanh %126 : vector<2x32xf32>
    %132 = arith.mulf %130, %131 : vector<2x32xf32>
    %133 = math.tanh %129 : vector<2x32xf32>
    %134 = arith.index_cast %c2_i32 : i32 to index
    %c0_42 = arith.constant 0 : index
    %c0_43 = arith.constant 0 : index
    %135 = vector.load %arg7[%134, %c0_42, %c0_43] : memref<8x2x64xf32, #tpu.memory_space<vmem>>, vector<1x2x32xf32>
    %136 = vector.shape_cast %135 : vector<1x2x32xf32> to vector<2x32xf32>
    %137 = vector.shape_cast %133 : vector<2x32xf32> to vector<1x2x32xf32>
    tpu.vector_store %arg7[%134, %c0_42, %c0_43], %137 {strides = array<i32>} : memref<8x2x64xf32, #tpu.memory_space<vmem>>, vector<1x2x32xf32>,
    %138 = math.tanh %132 : vector<2x32xf32>
    %139 = arith.index_cast %100 : i32 to index
    %c0_44 = arith.constant 0 : index
    %c32_45 = arith.constant 32 : index
    %140 = vector.load %arg7[%139, %c0_44, %c32_45] : memref<8x2x64xf32, #tpu.memory_space<vmem>>, vector<1x2x32xf32>
    %141 = vector.shape_cast %140 : vector<1x2x32xf32> to vector<2x32xf32>
    %142 = vector.shape_cast %138 : vector<2x32xf32> to vector<1x2x32xf32>
    tpu.vector_store %arg7[%139, %c0_44, %c32_45], %142 {strides = array<i32>} : memref<8x2x64xf32, #tpu.memory_space<vmem>>, vector<1x2x32xf32>,
    %143 = tpu.concatenate %129, %132 in 1 : vector<2x32xf32>, vector<2x32xf32> -> vector<2x64xf32>
    %c3_i32 = arith.constant 3 : i32
    %c7_i32_46 = arith.constant 7 : i32
    %144 = arith.subi %c7_i32_46, %c3_i32 : i32
    %145 = arith.index_cast %c3_i32 : i32 to index
    %c0_47 = arith.constant 0 : index
    %c0_48 = arith.constant 0 : index
    %146 = vector.load %arg9[%145, %c0_47, %c0_48] : memref<8x2x256xf32, #tpu.memory_space<vmem>>, vector<1x2x128xf32>
    %147 = vector.shape_cast %146 : vector<1x2x128xf32> to vector<2x128xf32>
    %148 = arith.index_cast %144 : i32 to index
    %c0_49 = arith.constant 0 : index
    %c128_50 = arith.constant 128 : index
    %149 = vector.load %arg9[%148, %c0_49, %c128_50] : memref<8x2x256xf32, #tpu.memory_space<vmem>>, vector<1x2x128xf32>
    %150 = vector.shape_cast %149 : vector<1x2x128xf32> to vector<2x128xf32>
    %151 = tpu.concatenate %147, %150 in 1 : vector<2x128xf32>, vector<2x128xf32> -> vector<2x256xf32>
    %cst_51 = arith.constant dense<0.000000e+00> : vector<2x256xf32>
    %152 = tpu.matmul %143, %0, %cst_51 {dimension_numbers = #tpu.dot_dimension_numbers<[1], [0], [0], [1], [0, 0, 1, 1], [], []>} : vector<2x64xf32>, vector<64x256xf32>, vector<2x256xf32> -> vector<2x256xf32>
    %153 = arith.addf %152, %151 : vector<2x256xf32>
    %154 = math.tanh %153 : vector<2x256xf32>
    %cst_52 = arith.constant 1.000000e+00 : f32
    %155 = vector.broadcast %cst_52 : f32 to vector<2x256xf32>
    %156 = arith.addf %154, %155 : vector<2x256xf32>
    %cst_53 = arith.constant 5.000000e-01 : f32
    %157 = vector.broadcast %cst_53 : f32 to vector<2x256xf32>
    %158 = arith.mulf %157, %156 : vector<2x256xf32>
    %159 = vector.extract_strided_slice %158 {offsets = [0, 32], sizes = [2, 32], strides = [1, 1]} : vector<2x256xf32> to vector<2x32xf32>
    %160 = arith.mulf %159, %120 : vector<2x32xf32>
    %161 = vector.extract_strided_slice %158 {offsets = [0, 0], sizes = [2, 32], strides = [1, 1]} : vector<2x256xf32> to vector<2x32xf32>
    %162 = vector.extract_strided_slice %154 {offsets = [0, 64], sizes = [2, 32], strides = [1, 1]} : vector<2x256xf32> to vector<2x32xf32>
    %163 = arith.mulf %161, %162 : vector<2x32xf32>
    %164 = arith.addf %160, %163 : vector<2x32xf32>
    %165 = vector.extract_strided_slice %158 {offsets = [0, 160], sizes = [2, 32], strides = [1, 1]} : vector<2x256xf32> to vector<2x32xf32>
    %166 = arith.mulf %165, %126 : vector<2x32xf32>
    %167 = vector.extract_strided_slice %158 {offsets = [0, 128], sizes = [2, 32], strides = [1, 1]} : vector<2x256xf32> to vector<2x32xf32>
    %168 = vector.extract_strided_slice %154 {offsets = [0, 192], sizes = [2, 32], strides = [1, 1]} : vector<2x256xf32> to vector<2x32xf32>
    %169 = arith.mulf %167, %168 : vector<2x32xf32>
    %170 = arith.addf %166, %169 : vector<2x32xf32>
    %171 = vector.extract_strided_slice %158 {offsets = [0, 96], sizes = [2, 32], strides = [1, 1]} : vector<2x256xf32> to vector<2x32xf32>
    %172 = math.tanh %164 : vector<2x32xf32>
    %173 = arith.mulf %171, %172 : vector<2x32xf32>
    %174 = vector.extract_strided_slice %158 {offsets = [0, 224], sizes = [2, 32], strides = [1, 1]} : vector<2x256xf32> to vector<2x32xf32>
    %175 = math.tanh %170 : vector<2x32xf32>
    %176 = arith.mulf %174, %175 : vector<2x32xf32>
    %177 = math.tanh %173 : vector<2x32xf32>
    %178 = arith.index_cast %c3_i32 : i32 to index
    %c0_54 = arith.constant 0 : index
    %c0_55 = arith.constant 0 : index
    %179 = vector.load %arg7[%178, %c0_54, %c0_55] : memref<8x2x64xf32, #tpu.memory_space<vmem>>, vector<1x2x32xf32>
    %180 = vector.shape_cast %179 : vector<1x2x32xf32> to vector<2x32xf32>
    %181 = vector.shape_cast %177 : vector<2x32xf32> to vector<1x2x32xf32>
    tpu.vector_store %arg7[%178, %c0_54, %c0_55], %181 {strides = array<i32>} : memref<8x2x64xf32, #tpu.memory_space<vmem>>, vector<1x2x32xf32>,
    %182 = math.tanh %176 : vector<2x32xf32>
    %183 = arith.index_cast %144 : i32 to index
    %c0_56 = arith.constant 0 : index
    %c32_57 = arith.constant 32 : index
    %184 = vector.load %arg7[%183, %c0_56, %c32_57] : memref<8x2x64xf32, #tpu.memory_space<vmem>>, vector<1x2x32xf32>
    %185 = vector.shape_cast %184 : vector<1x2x32xf32> to vector<2x32xf32>
    %186 = vector.shape_cast %182 : vector<2x32xf32> to vector<1x2x32xf32>
    tpu.vector_store %arg7[%183, %c0_56, %c32_57], %186 {strides = array<i32>} : memref<8x2x64xf32, #tpu.memory_space<vmem>>, vector<1x2x32xf32>,
    %187 = tpu.concatenate %173, %176 in 1 : vector<2x32xf32>, vector<2x32xf32> -> vector<2x64xf32>
    %c4_i32 = arith.constant 4 : i32
    %c7_i32_58 = arith.constant 7 : i32
    %188 = arith.subi %c7_i32_58, %c4_i32 : i32
    %189 = arith.index_cast %c4_i32 : i32 to index
    %c0_59 = arith.constant 0 : index
    %c0_60 = arith.constant 0 : index
    %190 = vector.load %arg9[%189, %c0_59, %c0_60] : memref<8x2x256xf32, #tpu.memory_space<vmem>>, vector<1x2x128xf32>
    %191 = vector.shape_cast %190 : vector<1x2x128xf32> to vector<2x128xf32>
    %192 = arith.index_cast %188 : i32 to index
    %c0_61 = arith.constant 0 : index
    %c128_62 = arith.constant 128 : index
    %193 = vector.load %arg9[%192, %c0_61, %c128_62] : memref<8x2x256xf32, #tpu.memory_space<vmem>>, vector<1x2x128xf32>
    %194 = vector.shape_cast %193 : vector<1x2x128xf32> to vector<2x128xf32>
    %195 = tpu.concatenate %191, %194 in 1 : vector<2x128xf32>, vector<2x128xf32> -> vector<2x256xf32>
    %cst_63 = arith.constant dense<0.000000e+00> : vector<2x256xf32>
    %196 = tpu.matmul %187, %0, %cst_63 {dimension_numbers = #tpu.dot_dimension_numbers<[1], [0], [0], [1], [0, 0, 1, 1], [], []>} : vector<2x64xf32>, vector<64x256xf32>, vector<2x256xf32> -> vector<2x256xf32>
    %197 = arith.addf %196, %195 : vector<2x256xf32>
    %198 = math.tanh %197 : vector<2x256xf32>
    %cst_64 = arith.constant 1.000000e+00 : f32
    %199 = vector.broadcast %cst_64 : f32 to vector<2x256xf32>
    %200 = arith.addf %198, %199 : vector<2x256xf32>
    %cst_65 = arith.constant 5.000000e-01 : f32
    %201 = vector.broadcast %cst_65 : f32 to vector<2x256xf32>
    %202 = arith.mulf %201, %200 : vector<2x256xf32>
    %203 = vector.extract_strided_slice %202 {offsets = [0, 32], sizes = [2, 32], strides = [1, 1]} : vector<2x256xf32> to vector<2x32xf32>
    %204 = arith.mulf %203, %164 : vector<2x32xf32>
    %205 = vector.extract_strided_slice %202 {offsets = [0, 0], sizes = [2, 32], strides = [1, 1]} : vector<2x256xf32> to vector<2x32xf32>
    %206 = vector.extract_strided_slice %198 {offsets = [0, 64], sizes = [2, 32], strides = [1, 1]} : vector<2x256xf32> to vector<2x32xf32>
    %207 = arith.mulf %205, %206 : vector<2x32xf32>
    %208 = arith.addf %204, %207 : vector<2x32xf32>
    %209 = vector.extract_strided_slice %202 {offsets = [0, 160], sizes = [2, 32], strides = [1, 1]} : vector<2x256xf32> to vector<2x32xf32>
    %210 = arith.mulf %209, %170 : vector<2x32xf32>
    %211 = vector.extract_strided_slice %202 {offsets = [0, 128], sizes = [2, 32], strides = [1, 1]} : vector<2x256xf32> to vector<2x32xf32>
    %212 = vector.extract_strided_slice %198 {offsets = [0, 192], sizes = [2, 32], strides = [1, 1]} : vector<2x256xf32> to vector<2x32xf32>
    %213 = arith.mulf %211, %212 : vector<2x32xf32>
    %214 = arith.addf %210, %213 : vector<2x32xf32>
    %215 = vector.extract_strided_slice %202 {offsets = [0, 96], sizes = [2, 32], strides = [1, 1]} : vector<2x256xf32> to vector<2x32xf32>
    %216 = math.tanh %208 : vector<2x32xf32>
    %217 = arith.mulf %215, %216 : vector<2x32xf32>
    %218 = vector.extract_strided_slice %202 {offsets = [0, 224], sizes = [2, 32], strides = [1, 1]} : vector<2x256xf32> to vector<2x32xf32>
    %219 = math.tanh %214 : vector<2x32xf32>
    %220 = arith.mulf %218, %219 : vector<2x32xf32>
    %221 = math.tanh %217 : vector<2x32xf32>
    %222 = arith.index_cast %c4_i32 : i32 to index
    %c0_66 = arith.constant 0 : index
    %c0_67 = arith.constant 0 : index
    %223 = vector.load %arg7[%222, %c0_66, %c0_67] : memref<8x2x64xf32, #tpu.memory_space<vmem>>, vector<1x2x32xf32>
    %224 = vector.shape_cast %223 : vector<1x2x32xf32> to vector<2x32xf32>
    %225 = vector.shape_cast %221 : vector<2x32xf32> to vector<1x2x32xf32>
    tpu.vector_store %arg7[%222, %c0_66, %c0_67], %225 {strides = array<i32>} : memref<8x2x64xf32, #tpu.memory_space<vmem>>, vector<1x2x32xf32>,
    %226 = math.tanh %220 : vector<2x32xf32>
    %227 = arith.index_cast %188 : i32 to index
    %c0_68 = arith.constant 0 : index
    %c32_69 = arith.constant 32 : index
    %228 = vector.load %arg7[%227, %c0_68, %c32_69] : memref<8x2x64xf32, #tpu.memory_space<vmem>>, vector<1x2x32xf32>
    %229 = vector.shape_cast %228 : vector<1x2x32xf32> to vector<2x32xf32>
    %230 = vector.shape_cast %226 : vector<2x32xf32> to vector<1x2x32xf32>
    tpu.vector_store %arg7[%227, %c0_68, %c32_69], %230 {strides = array<i32>} : memref<8x2x64xf32, #tpu.memory_space<vmem>>, vector<1x2x32xf32>,
    %231 = tpu.concatenate %217, %220 in 1 : vector<2x32xf32>, vector<2x32xf32> -> vector<2x64xf32>
    %c5_i32 = arith.constant 5 : i32
    %c7_i32_70 = arith.constant 7 : i32
    %232 = arith.subi %c7_i32_70, %c5_i32 : i32
    %233 = arith.index_cast %c5_i32 : i32 to index
    %c0_71 = arith.constant 0 : index
    %c0_72 = arith.constant 0 : index
    %234 = vector.load %arg9[%233, %c0_71, %c0_72] : memref<8x2x256xf32, #tpu.memory_space<vmem>>, vector<1x2x128xf32>
    %235 = vector.shape_cast %234 : vector<1x2x128xf32> to vector<2x128xf32>
    %236 = arith.index_cast %232 : i32 to index
    %c0_73 = arith.constant 0 : index
    %c128_74 = arith.constant 128 : index
    %237 = vector.load %arg9[%236, %c0_73, %c128_74] : memref<8x2x256xf32, #tpu.memory_space<vmem>>, vector<1x2x128xf32>
    %238 = vector.shape_cast %237 : vector<1x2x128xf32> to vector<2x128xf32>
    %239 = tpu.concatenate %235, %238 in 1 : vector<2x128xf32>, vector<2x128xf32> -> vector<2x256xf32>
    %cst_75 = arith.constant dense<0.000000e+00> : vector<2x256xf32>
    %240 = tpu.matmul %231, %0, %cst_75 {dimension_numbers = #tpu.dot_dimension_numbers<[1], [0], [0], [1], [0, 0, 1, 1], [], []>} : vector<2x64xf32>, vector<64x256xf32>, vector<2x256xf32> -> vector<2x256xf32>
    %241 = arith.addf %240, %239 : vector<2x256xf32>
    %242 = math.tanh %241 : vector<2x256xf32>
    %cst_76 = arith.constant 1.000000e+00 : f32
    %243 = vector.broadcast %cst_76 : f32 to vector<2x256xf32>
    %244 = arith.addf %242, %243 : vector<2x256xf32>
    %cst_77 = arith.constant 5.000000e-01 : f32
    %245 = vector.broadcast %cst_77 : f32 to vector<2x256xf32>
    %246 = arith.mulf %245, %244 : vector<2x256xf32>
    %247 = vector.extract_strided_slice %246 {offsets = [0, 32], sizes = [2, 32], strides = [1, 1]} : vector<2x256xf32> to vector<2x32xf32>
    %248 = arith.mulf %247, %208 : vector<2x32xf32>
    %249 = vector.extract_strided_slice %246 {offsets = [0, 0], sizes = [2, 32], strides = [1, 1]} : vector<2x256xf32> to vector<2x32xf32>
    %250 = vector.extract_strided_slice %242 {offsets = [0, 64], sizes = [2, 32], strides = [1, 1]} : vector<2x256xf32> to vector<2x32xf32>
    %251 = arith.mulf %249, %250 : vector<2x32xf32>
    %252 = arith.addf %248, %251 : vector<2x32xf32>
    %253 = vector.extract_strided_slice %246 {offsets = [0, 160], sizes = [2, 32], strides = [1, 1]} : vector<2x256xf32> to vector<2x32xf32>
    %254 = arith.mulf %253, %214 : vector<2x32xf32>
    %255 = vector.extract_strided_slice %246 {offsets = [0, 128], sizes = [2, 32], strides = [1, 1]} : vector<2x256xf32> to vector<2x32xf32>
    %256 = vector.extract_strided_slice %242 {offsets = [0, 192], sizes = [2, 32], strides = [1, 1]} : vector<2x256xf32> to vector<2x32xf32>
    %257 = arith.mulf %255, %256 : vector<2x32xf32>
    %258 = arith.addf %254, %257 : vector<2x32xf32>
    %259 = vector.extract_strided_slice %246 {offsets = [0, 96], sizes = [2, 32], strides = [1, 1]} : vector<2x256xf32> to vector<2x32xf32>
    %260 = math.tanh %252 : vector<2x32xf32>
    %261 = arith.mulf %259, %260 : vector<2x32xf32>
    %262 = vector.extract_strided_slice %246 {offsets = [0, 224], sizes = [2, 32], strides = [1, 1]} : vector<2x256xf32> to vector<2x32xf32>
    %263 = math.tanh %258 : vector<2x32xf32>
    %264 = arith.mulf %262, %263 : vector<2x32xf32>
    %265 = math.tanh %261 : vector<2x32xf32>
    %266 = arith.index_cast %c5_i32 : i32 to index
    %c0_78 = arith.constant 0 : index
    %c0_79 = arith.constant 0 : index
    %267 = vector.load %arg7[%266, %c0_78, %c0_79] : memref<8x2x64xf32, #tpu.memory_space<vmem>>, vector<1x2x32xf32>
    %268 = vector.shape_cast %267 : vector<1x2x32xf32> to vector<2x32xf32>
    %269 = vector.shape_cast %265 : vector<2x32xf32> to vector<1x2x32xf32>
    tpu.vector_store %arg7[%266, %c0_78, %c0_79], %269 {strides = array<i32>} : memref<8x2x64xf32, #tpu.memory_space<vmem>>, vector<1x2x32xf32>,
    %270 = math.tanh %264 : vector<2x32xf32>
    %271 = arith.index_cast %232 : i32 to index
    %c0_80 = arith.constant 0 : index
    %c32_81 = arith.constant 32 : index
    %272 = vector.load %arg7[%271, %c0_80, %c32_81] : memref<8x2x64xf32, #tpu.memory_space<vmem>>, vector<1x2x32xf32>
    %273 = vector.shape_cast %272 : vector<1x2x32xf32> to vector<2x32xf32>
    %274 = vector.shape_cast %270 : vector<2x32xf32> to vector<1x2x32xf32>
    tpu.vector_store %arg7[%271, %c0_80, %c32_81], %274 {strides = array<i32>} : memref<8x2x64xf32, #tpu.memory_space<vmem>>, vector<1x2x32xf32>,
    %275 = tpu.concatenate %261, %264 in 1 : vector<2x32xf32>, vector<2x32xf32> -> vector<2x64xf32>
    %c6_i32 = arith.constant 6 : i32
    %c7_i32_82 = arith.constant 7 : i32
    %276 = arith.subi %c7_i32_82, %c6_i32 : i32
    %277 = arith.index_cast %c6_i32 : i32 to index
    %c0_83 = arith.constant 0 : index
    %c0_84 = arith.constant 0 : index
    %278 = vector.load %arg9[%277, %c0_83, %c0_84] : memref<8x2x256xf32, #tpu.memory_space<vmem>>, vector<1x2x128xf32>
    %279 = vector.shape_cast %278 : vector<1x2x128xf32> to vector<2x128xf32>
    %280 = arith.index_cast %276 : i32 to index
    %c0_85 = arith.constant 0 : index
    %c128_86 = arith.constant 128 : index
    %281 = vector.load %arg9[%280, %c0_85, %c128_86] : memref<8x2x256xf32, #tpu.memory_space<vmem>>, vector<1x2x128xf32>
    %282 = vector.shape_cast %281 : vector<1x2x128xf32> to vector<2x128xf32>
    %283 = tpu.concatenate %279, %282 in 1 : vector<2x128xf32>, vector<2x128xf32> -> vector<2x256xf32>
    %cst_87 = arith.constant dense<0.000000e+00> : vector<2x256xf32>
    %284 = tpu.matmul %275, %0, %cst_87 {dimension_numbers = #tpu.dot_dimension_numbers<[1], [0], [0], [1], [0, 0, 1, 1], [], []>} : vector<2x64xf32>, vector<64x256xf32>, vector<2x256xf32> -> vector<2x256xf32>
    %285 = arith.addf %284, %283 : vector<2x256xf32>
    %286 = math.tanh %285 : vector<2x256xf32>
    %cst_88 = arith.constant 1.000000e+00 : f32
    %287 = vector.broadcast %cst_88 : f32 to vector<2x256xf32>
    %288 = arith.addf %286, %287 : vector<2x256xf32>
    %cst_89 = arith.constant 5.000000e-01 : f32
    %289 = vector.broadcast %cst_89 : f32 to vector<2x256xf32>
    %290 = arith.mulf %289, %288 : vector<2x256xf32>
    %291 = vector.extract_strided_slice %290 {offsets = [0, 32], sizes = [2, 32], strides = [1, 1]} : vector<2x256xf32> to vector<2x32xf32>
    %292 = arith.mulf %291, %252 : vector<2x32xf32>
    %293 = vector.extract_strided_slice %290 {offsets = [0, 0], sizes = [2, 32], strides = [1, 1]} : vector<2x256xf32> to vector<2x32xf32>
    %294 = vector.extract_strided_slice %286 {offsets = [0, 64], sizes = [2, 32], strides = [1, 1]} : vector<2x256xf32> to vector<2x32xf32>
    %295 = arith.mulf %293, %294 : vector<2x32xf32>
    %296 = arith.addf %292, %295 : vector<2x32xf32>
    %297 = vector.extract_strided_slice %290 {offsets = [0, 160], sizes = [2, 32], strides = [1, 1]} : vector<2x256xf32> to vector<2x32xf32>
    %298 = arith.mulf %297, %258 : vector<2x32xf32>
    %299 = vector.extract_strided_slice %290 {offsets = [0, 128], sizes = [2, 32], strides = [1, 1]} : vector<2x256xf32> to vector<2x32xf32>
    %300 = vector.extract_strided_slice %286 {offsets = [0, 192], sizes = [2, 32], strides = [1, 1]} : vector<2x256xf32> to vector<2x32xf32>
    %301 = arith.mulf %299, %300 : vector<2x32xf32>
    %302 = arith.addf %298, %301 : vector<2x32xf32>
    %303 = vector.extract_strided_slice %290 {offsets = [0, 96], sizes = [2, 32], strides = [1, 1]} : vector<2x256xf32> to vector<2x32xf32>
    %304 = math.tanh %296 : vector<2x32xf32>
    %305 = arith.mulf %303, %304 : vector<2x32xf32>
    %306 = vector.extract_strided_slice %290 {offsets = [0, 224], sizes = [2, 32], strides = [1, 1]} : vector<2x256xf32> to vector<2x32xf32>
    %307 = math.tanh %302 : vector<2x32xf32>
    %308 = arith.mulf %306, %307 : vector<2x32xf32>
    %309 = math.tanh %305 : vector<2x32xf32>
    %310 = arith.index_cast %c6_i32 : i32 to index
    %c0_90 = arith.constant 0 : index
    %c0_91 = arith.constant 0 : index
    %311 = vector.load %arg7[%310, %c0_90, %c0_91] : memref<8x2x64xf32, #tpu.memory_space<vmem>>, vector<1x2x32xf32>
    %312 = vector.shape_cast %311 : vector<1x2x32xf32> to vector<2x32xf32>
    %313 = vector.shape_cast %309 : vector<2x32xf32> to vector<1x2x32xf32>
    tpu.vector_store %arg7[%310, %c0_90, %c0_91], %313 {strides = array<i32>} : memref<8x2x64xf32, #tpu.memory_space<vmem>>, vector<1x2x32xf32>,
    %314 = math.tanh %308 : vector<2x32xf32>
    %315 = arith.index_cast %276 : i32 to index
    %c0_92 = arith.constant 0 : index
    %c32_93 = arith.constant 32 : index
    %316 = vector.load %arg7[%315, %c0_92, %c32_93] : memref<8x2x64xf32, #tpu.memory_space<vmem>>, vector<1x2x32xf32>
    %317 = vector.shape_cast %316 : vector<1x2x32xf32> to vector<2x32xf32>
    %318 = vector.shape_cast %314 : vector<2x32xf32> to vector<1x2x32xf32>
    tpu.vector_store %arg7[%315, %c0_92, %c32_93], %318 {strides = array<i32>} : memref<8x2x64xf32, #tpu.memory_space<vmem>>, vector<1x2x32xf32>,
    %319 = tpu.concatenate %305, %308 in 1 : vector<2x32xf32>, vector<2x32xf32> -> vector<2x64xf32>
    %c7_i32_94 = arith.constant 7 : i32
    %c7_i32_95 = arith.constant 7 : i32
    %320 = arith.subi %c7_i32_95, %c7_i32_94 : i32
    %321 = arith.index_cast %c7_i32_94 : i32 to index
    %c0_96 = arith.constant 0 : index
    %c0_97 = arith.constant 0 : index
    %322 = vector.load %arg9[%321, %c0_96, %c0_97] : memref<8x2x256xf32, #tpu.memory_space<vmem>>, vector<1x2x128xf32>
    %323 = vector.shape_cast %322 : vector<1x2x128xf32> to vector<2x128xf32>
    %324 = arith.index_cast %320 : i32 to index
    %c0_98 = arith.constant 0 : index
    %c128_99 = arith.constant 128 : index
    %325 = vector.load %arg9[%324, %c0_98, %c128_99] : memref<8x2x256xf32, #tpu.memory_space<vmem>>, vector<1x2x128xf32>
    %326 = vector.shape_cast %325 : vector<1x2x128xf32> to vector<2x128xf32>
    %327 = tpu.concatenate %323, %326 in 1 : vector<2x128xf32>, vector<2x128xf32> -> vector<2x256xf32>
    %cst_100 = arith.constant dense<0.000000e+00> : vector<2x256xf32>
    %328 = tpu.matmul %319, %0, %cst_100 {dimension_numbers = #tpu.dot_dimension_numbers<[1], [0], [0], [1], [0, 0, 1, 1], [], []>} : vector<2x64xf32>, vector<64x256xf32>, vector<2x256xf32> -> vector<2x256xf32>
    %329 = arith.addf %328, %327 : vector<2x256xf32>
    %330 = math.tanh %329 : vector<2x256xf32>
    %cst_101 = arith.constant 1.000000e+00 : f32
    %331 = vector.broadcast %cst_101 : f32 to vector<2x256xf32>
    %332 = arith.addf %330, %331 : vector<2x256xf32>
    %cst_102 = arith.constant 5.000000e-01 : f32
    %333 = vector.broadcast %cst_102 : f32 to vector<2x256xf32>
    %334 = arith.mulf %333, %332 : vector<2x256xf32>
    %335 = vector.extract_strided_slice %334 {offsets = [0, 32], sizes = [2, 32], strides = [1, 1]} : vector<2x256xf32> to vector<2x32xf32>
    %336 = arith.mulf %335, %296 : vector<2x32xf32>
    %337 = vector.extract_strided_slice %334 {offsets = [0, 0], sizes = [2, 32], strides = [1, 1]} : vector<2x256xf32> to vector<2x32xf32>
    %338 = vector.extract_strided_slice %330 {offsets = [0, 64], sizes = [2, 32], strides = [1, 1]} : vector<2x256xf32> to vector<2x32xf32>
    %339 = arith.mulf %337, %338 : vector<2x32xf32>
    %340 = arith.addf %336, %339 : vector<2x32xf32>
    %341 = vector.extract_strided_slice %334 {offsets = [0, 160], sizes = [2, 32], strides = [1, 1]} : vector<2x256xf32> to vector<2x32xf32>
    %342 = arith.mulf %341, %302 : vector<2x32xf32>
    %343 = vector.extract_strided_slice %334 {offsets = [0, 128], sizes = [2, 32], strides = [1, 1]} : vector<2x256xf32> to vector<2x32xf32>
    %344 = vector.extract_strided_slice %330 {offsets = [0, 192], sizes = [2, 32], strides = [1, 1]} : vector<2x256xf32> to vector<2x32xf32>
    %345 = arith.mulf %343, %344 : vector<2x32xf32>
    %346 = arith.addf %342, %345 : vector<2x32xf32>
    %347 = vector.extract_strided_slice %334 {offsets = [0, 96], sizes = [2, 32], strides = [1, 1]} : vector<2x256xf32> to vector<2x32xf32>
    %348 = math.tanh %340 : vector<2x32xf32>
    %349 = arith.mulf %347, %348 : vector<2x32xf32>
    %350 = vector.extract_strided_slice %334 {offsets = [0, 224], sizes = [2, 32], strides = [1, 1]} : vector<2x256xf32> to vector<2x32xf32>
    %351 = math.tanh %346 : vector<2x32xf32>
    %352 = arith.mulf %350, %351 : vector<2x32xf32>
    %353 = math.tanh %349 : vector<2x32xf32>
    %354 = arith.index_cast %c7_i32_94 : i32 to index
    %c0_103 = arith.constant 0 : index
    %c0_104 = arith.constant 0 : index
    %355 = vector.load %arg7[%354, %c0_103, %c0_104] : memref<8x2x64xf32, #tpu.memory_space<vmem>>, vector<1x2x32xf32>
    %356 = vector.shape_cast %355 : vector<1x2x32xf32> to vector<2x32xf32>
    %357 = vector.shape_cast %353 : vector<2x32xf32> to vector<1x2x32xf32>
    tpu.vector_store %arg7[%354, %c0_103, %c0_104], %357 {strides = array<i32>} : memref<8x2x64xf32, #tpu.memory_space<vmem>>, vector<1x2x32xf32>,
    %358 = math.tanh %352 : vector<2x32xf32>
    %359 = arith.index_cast %320 : i32 to index
    %c0_105 = arith.constant 0 : index
    %c32_106 = arith.constant 32 : index
    %360 = vector.load %arg7[%359, %c0_105, %c32_106] : memref<8x2x64xf32, #tpu.memory_space<vmem>>, vector<1x2x32xf32>
    %361 = vector.shape_cast %360 : vector<1x2x32xf32> to vector<2x32xf32>
    %362 = vector.shape_cast %358 : vector<2x32xf32> to vector<1x2x32xf32>
    tpu.vector_store %arg7[%359, %c0_105, %c32_106], %362 {strides = array<i32>} : memref<8x2x64xf32, #tpu.memory_space<vmem>>, vector<1x2x32xf32>,
    %363 = tpu.concatenate %349, %352 in 1 : vector<2x32xf32>, vector<2x32xf32> -> vector<2x64xf32>
    %c8_i32 = arith.constant 8 : i32
    %c0_107 = arith.constant 0 : index
    %c0_108 = arith.constant 0 : index
    %c0_109 = arith.constant 0 : index
    %364 = vector.load %arg7[%c0_107, %c0_108, %c0_109] : memref<8x2x64xf32, #tpu.memory_space<vmem>>, vector<8x2x64xf32>
    %365 = vector.shape_cast %364 : vector<8x2x64xf32> to vector<16x64xf32>
    %c0_110 = arith.constant 0 : index
    %c0_111 = arith.constant 0 : index
    %366 = vector.load %arg5[%c0_110, %c0_111] : memref<64x16xf32, #tpu.memory_space<vmem>>, vector<64x16xf32>
    %cst_112 = arith.constant dense<0.000000e+00> : vector<16x16xf32>
    %367 = tpu.matmul %365, %366, %cst_112 {dimension_numbers = #tpu.dot_dimension_numbers<[1], [0], [0], [1], [0, 0, 1, 1], [], []>} : vector<16x64xf32>, vector<64x16xf32>, vector<16x16xf32> -> vector<16x16xf32>
    %c0_113 = arith.constant 0 : index
    %c0_114 = arith.constant 0 : index
    %368 = vector.load %arg6[%c0_113, %c0_114] : memref<1x16xf32, #tpu.memory_space<vmem>>, vector<1x16xf32>
    %369 = vector.broadcast %368 : vector<1x16xf32> to vector<16x16xf32>
    %370 = arith.addf %367, %369 : vector<16x16xf32>
    %371 = vector.shape_cast %370 : vector<16x16xf32> to vector<8x2x16xf32>
    %c0_115 = arith.constant 0 : index
    %c0_116 = arith.constant 0 : index
    %c0_117 = arith.constant 0 : index
    %372 = vector.load %arg8[%c0_115, %c0_116, %c0_117] : memref<8x2x16xf32, #tpu.memory_space<vmem>>, vector<8x2x16xf32>
    tpu.vector_store %arg8[%c0_115, %c0_116, %c0_117], %371 {strides = array<i32>} : memref<8x2x16xf32, #tpu.memory_space<vmem>>, vector<8x2x16xf32>,
    return
  }
  func.func @transform_0(%arg0: i32) -> (i32, i32, i32) {
    %c0_i32 = arith.constant 0 : i32
    %c0_i32_0 = arith.constant 0 : i32
    %c0_i32_1 = arith.constant 0 : i32
    return %c0_i32, %arg0, %c0_i32_0 : i32, i32, i32
  }
  func.func @transform_1(%arg0: i32) -> (i32, i32) {
    %c0_i32 = arith.constant 0 : i32
    %c0_i32_0 = arith.constant 0 : i32
    %c0_i32_1 = arith.constant 0 : i32
    return %c0_i32, %c0_i32_0 : i32, i32
  }
  func.func @transform_2(%arg0: i32) -> (i32, i32) {
    %c0_i32 = arith.constant 0 : i32
    %c0_i32_0 = arith.constant 0 : i32
    %c0_i32_1 = arith.constant 0 : i32
    return %c0_i32, %c0_i32_0 : i32, i32
  }
  func.func @transform_3(%arg0: i32) -> (i32, i32) {
    %c0_i32 = arith.constant 0 : i32
    %c0_i32_0 = arith.constant 0 : i32
    %c0_i32_1 = arith.constant 0 : i32
    return %c0_i32, %c0_i32_0 : i32, i32
  }
  func.func @transform_4(%arg0: i32) -> (i32, i32) {
    %c0_i32 = arith.constant 0 : i32
    %c0_i32_0 = arith.constant 0 : i32
    %c0_i32_1 = arith.constant 0 : i32
    return %c0_i32, %c0_i32_0 : i32, i32
  }
  func.func @transform_5(%arg0: i32) -> (i32, i32) {
    %c0_i32 = arith.constant 0 : i32
    %c0_i32_0 = arith.constant 0 : i32
    %c0_i32_1 = arith.constant 0 : i32
    return %c0_i32, %c0_i32_0 : i32, i32
  }
  func.func @transform_6(%arg0: i32) -> (i32, i32, i32) {
    %c0_i32 = arith.constant 0 : i32
    %c0_i32_0 = arith.constant 0 : i32
    %c0_i32_1 = arith.constant 0 : i32
    return %c0_i32, %arg0, %c0_i32_0 : i32, i32, i32
  }
  func.func @transform_7(%arg0: i32) -> (i32, i32, i32) {
    %c0_i32 = arith.constant 0 : i32
    %c0_i32_0 = arith.constant 0 : i32
    %c0_i32_1 = arith.constant 0 : i32
    return %c0_i32, %arg0, %c0_i32_0 : i32, i32, i32
  }
}

</mosaic_0001>

<llo_original>
// kernel: tpu_custom_call.1
$region0: #{tpu_custom_call.1}
  #allocation0 [shape = 'u32[]', space=smem, size = 0x4, offset = 0x4, fixed_abs, tag = 'smem constant byte address 0x4 - core index']
  #allocation1 [shape = 'u32[72,128]{1,0:T(1,128)}', space=vmem, size = 0x9000, scoped, tag = 'internal scratch']
  #allocation2 [shape = 'f32[8,2,256]{2,1,0:T(2,128)}', space=vmem, size = 0x4000, scoped, tag = 'scratch operand']
  %s0 = inlined_call_operand.vmem [shape: f32[8,2,16], index: 0, kind: input, shape index: {}]
  %s1 = inlined_call_operand.vmem [shape: f32[16,256], index: 1, kind: input, shape index: {}]
  %s2 = inlined_call_operand.hbm [shape: f32[64,256], index: 2, kind: input, shape index: {}]
  %s3 = inlined_call_operand.vmem [shape: f32[1,256], index: 3, kind: input, shape index: {}]
  %s4 = inlined_call_operand.vmem [shape: f32[64,16], index: 4, kind: input, shape index: {}]
  %s5 = inlined_call_operand.vmem [shape: f32[1,16], index: 5, kind: input, shape index: {}]
  %s6 = inlined_call_operand.hbm [shape: f32[8,2,64], index: 6, kind: output, shape index: {0}]
  %s7 = inlined_call_operand.hbm [shape: f32[8,2,16], index: 7, kind: output, shape index: {1}]
  %8 = xla_tuple %s6, %s7
  %s9 = sld [smem:[#allocation0]]
  $region46: #{tpu_custom_call.1} parent=0
    _
  %s11 = ssub.s32 1, %s9
  %s12 = scalar_select 0, %s11, %s9
  $region1: #{tpu_custom_call.1} parent=0
    #allocation3 [shape = 'u8[65536]{0}', space=vmem, size = 0x10000, scoped, tag = 'input window, operand 2, single buffered']
    #allocation4 [shape = 's32[1]{0}', space=sflag, size = 0x4, scoped, tag = 'scoped memory for tpu_custom_call.1']
    #allocation5 [shape = 's32[1]{0}', space=sflag, size = 0x4, scoped, tag = 'scoped memory for tpu_custom_call.1']
    #allocation6 [shape = 'u8[8192]{0}', space=vmem, size = 0x2000, scoped, tag = 'output window, operand 0, single buffered']
    #allocation7 [shape = 'u8[8192]{0}', space=vmem, size = 0x2000, scoped, tag = 'output window, operand 1, single buffered']
    #allocation8 [shape = 's32[1]{0}', space=sflag, size = 0x4, scoped, tag = 'scoped memory for tpu_custom_call.1']
    %13 = vsyncpa [#allocation4], 0
    %14 = vsyncpa [#allocation5], 0
    %15 = vsyncpa [#allocation8], 0
    // Predicated region
    $region2: #{tpu_custom_call.1} parent=1 // pred_check
      _
    $region3: #{tpu_custom_call.1} parent=1 // pred_check_branch
      %17 = sbr.rel (0) target = $region5
    $region4: #{tpu_custom_call.1} parent=1 // pred_region
      _
    $region5: #{tpu_custom_call.1} parent=1 // pred_fallthru
      _
    // Predicated region
    $region6: #{tpu_custom_call.1} parent=1 // pred_check
      _
    $region7: #{tpu_custom_call.1} parent=1 // pred_check_branch
      %19 = sbr.rel (0) target = $region9
    $region8: #{tpu_custom_call.1} parent=1 // pred_region
      _
    $region9: #{tpu_custom_call.1} parent=1 // pred_fallthru
      _
    // Predicated region
    $region10: #{tpu_custom_call.1} parent=1 // pred_check
      _
    $region11: #{tpu_custom_call.1} parent=1 // pred_check_branch
      %21 = sbr.rel (0) target = $region13
    $region12: #{tpu_custom_call.1} parent=1 // pred_region
      %23 = vsyncadd [#allocation4], 0
      %s24 = sshll.u32 %s2, 4
      %s25 = int_to_ptr.hbm [resolvable:$true] %s24
      %s26 = sshll.u32 [#allocation3], 4
      %s27 = int_to_ptr.vmem [resolvable:$true] %s26
      %32 = dma.hbm_to_vmem [thread:$0]  %s25, 2048, %s27, [#allocation4], 256, 256, 16
    $region13: #{tpu_custom_call.1} parent=1 // pred_fallthru
      _
    // Predicated region
    $region14: #{tpu_custom_call.1} parent=1 // pred_check
      _
    $region15: #{tpu_custom_call.1} parent=1 // pred_check_branch
      %34 = sbr.rel (0) target = $region17
    $region16: #{tpu_custom_call.1} parent=1 // pred_region
      _
    $region17: #{tpu_custom_call.1} parent=1 // pred_fallthru
      _
    // Predicated region
    $region18: #{tpu_custom_call.1} parent=1 // pred_check
      _
    $region19: #{tpu_custom_call.1} parent=1 // pred_check_branch
      %36 = sbr.rel (0) target = $region21
    $region20: #{tpu_custom_call.1} parent=1 // pred_region
      _
    $region21: #{tpu_custom_call.1} parent=1 // pred_fallthru
      _
    // Predicated region
    $region22: #{tpu_custom_call.1} parent=1 // pred_check
      _
    $region23: #{tpu_custom_call.1} parent=1 // pred_check_branch
      %38 = sbr.rel (0) target = $region25
    $region24: #{tpu_custom_call.1} parent=1 // pred_region
      _
    $region25: #{tpu_custom_call.1} parent=1 // pred_fallthru
      _
    // Predicated region
    $region26: #{tpu_custom_call.1} parent=1 // pred_check
      _
    $region27: #{tpu_custom_call.1} parent=1 // pred_check_branch
      %40 = sbr.rel (0) target = $region29
    $region28: #{tpu_custom_call.1} parent=1 // pred_region
      %42 = dma.done [#allocation4], 2048
    $region29: #{tpu_custom_call.1} parent=1 // pred_fallthru
      _
    %v43 = vld [vmem:[#allocation3] sm:$0xff]
    %v44 = vld [vmem:[#allocation3 + $0x8] sm:$0xff]
    %v45 = vld [vmem:[#allocation3 + $0x10] sm:$0xff]
    %v46 = vld [vmem:[#allocation3 + $0x18] sm:$0xff]
    %v47 = vld [vmem:[#allocation3 + $0x20] sm:$0xff]
    %v48 = vld [vmem:[#allocation3 + $0x28] sm:$0xff]
    %v49 = vld [vmem:[#allocation3 + $0x30] sm:$0xff]
    %v50 = vld [vmem:[#allocation3 + $0x38] sm:$0xff]
    %v51 = vld [vmem:[#allocation3 + $0x40] sm:$0xff]
    %v52 = vld [vmem:[#allocation3 + $0x48] sm:$0xff]
    %v53 = vld [vmem:[#allocation3 + $0x50] sm:$0xff]
    %v54 = vld [vmem:[#allocation3 + $0x58] sm:$0xff]
    %v55 = vld [vmem:[#allocation3 + $0x60] sm:$0xff]
    %v56 = vld [vmem:[#allocation3 + $0x68] sm:$0xff]
    %v57 = vld [vmem:[#allocation3 + $0x70] sm:$0xff]
    %v58 = vld [vmem:[#allocation3 + $0x78] sm:$0xff]
    %v59 = vld [vmem:[%s0] sm:$0x3]
    %v60 = vld [vmem:[%s0 + $0x2] sm:$0x3]
    %v61 = vld [vmem:[%s0 + $0x4] sm:$0x3]
    %v62 = vld [vmem:[%s0 + $0x6] sm:$0x3]
    %v63 = vld [vmem:[%s0 + $0x8] sm:$0x3]
    %v64 = vld [vmem:[%s0 + $0xa] sm:$0x3]
    %v65 = vld [vmem:[%s0 + $0xc] sm:$0x3]
    %v66 = vld [vmem:[%s0 + $0xe] sm:$0x3]
    %v67 = vld [vmem:[%s1] sm:$0xff]
    %v68 = vld [vmem:[%s1 + $0x8] sm:$0xff]
    %v69 = vld [vmem:[%s1 + $0x10] sm:$0xff]
    %v70 = vld [vmem:[%s1 + $0x18] sm:$0xff]
    %v71 = vld [vmem:[%s3] sm:$0x3]
    %v73 = vperm.slane %v71, 0
    %v74 = vperm.slane %v71, 1
    %85 = vst [vmem:[#allocation1] ss:$4 sm:$0xff] %v59
    %s86 = scalar_lea.vmem [#allocation1], 1
    %87 = vst [vmem:[%s86] ss:$4 sm:$0xff] %v60
    %s88 = scalar_lea.vmem [#allocation1], 2
    %89 = vst [vmem:[%s88] ss:$4 sm:$0xff] %v61
    %s90 = scalar_lea.vmem [#allocation1], 3
    %91 = vst [vmem:[%s90] ss:$4 sm:$0xff] %v62
    %s92 = scalar_lea.vmem [#allocation1], 32
    %93 = vst [vmem:[%s92] ss:$4 sm:$0xff] %v63
    %s94 = scalar_lea.vmem [#allocation1], 33
    %95 = vst [vmem:[%s94] ss:$4 sm:$0xff] %v64
    %s96 = scalar_lea.vmem [#allocation1], 34
    %97 = vst [vmem:[%s96] ss:$4 sm:$0xff] %v65
    %s98 = scalar_lea.vmem [#allocation1], 35
    %99 = vst [vmem:[%s98] ss:$4 sm:$0xff] %v66
    %v100 = vld.sshfl [vmem:[#allocation1] sm:$0xff pattern:$0x73625140]
    %v101 = vld.sshfl [vmem:[#allocation1 + $0x20] sm:$0xff pattern:$0x73625140]
    %vm102 = vcmask 130048
    %v103 = vsel %vm102, %v100, 0
    %v105 = vsel %vm102, %v101, 0
    %107 = vmatpush.msra.mxu0 0.0
    %108 = vmatpush.msra.mxu0 0.0
    %109 = vmatpush.msra.mxu0 0.0
    %110 = vmatpush.msra.mxu0 0.0
    %111 = vmatpush.msra.mxu0 0.0
    %112 = vmatpush.msra.mxu0 0.0
    %113 = vmatpush.msra.mxu0 0.0
    %114 = vmatpush.msra.mxu0 0.0
    %115 = vmatpush.msra.mxu0 0.0
    %116 = vmatpush.msra.mxu0 0.0
    %117 = vmatpush.msra.mxu0 0.0
    %118 = vmatpush.msra.mxu0 0.0
    %119 = vmatpush.msra.mxu0 0.0
    %120 = vmatpush.msra.mxu0 0.0
    %121 = vmatpush.msra.mxu0 %v69
    %122 = vmatpush.msra.mxu0 %v67
    %123 = vmatmul.f32.gmra.mxu0 %v103
    %v124 = vpop.f32.mrf.mxu0
    %v125 = vadd.f32 %v73, %v124
    %126 = vmatmul.f32.gmra.mxu0 %v105
    %v127 = vpop.f32.mrf.mxu0
    %v128 = vadd.f32 %v73, %v127
    %129 = vdwg.mxu0
    %130 = vmatpush.msra.mxu0 0.0
    %131 = vmatpush.msra.mxu0 0.0
    %132 = vmatpush.msra.mxu0 0.0
    %133 = vmatpush.msra.mxu0 0.0
    %134 = vmatpush.msra.mxu0 0.0
    %135 = vmatpush.msra.mxu0 0.0
    %136 = vmatpush.msra.mxu0 0.0
    %137 = vmatpush.msra.mxu0 0.0
    %138 = vmatpush.msra.mxu0 0.0
    %139 = vmatpush.msra.mxu0 0.0
    %140 = vmatpush.msra.mxu0 0.0
    %141 = vmatpush.msra.mxu0 0.0
    %142 = vmatpush.msra.mxu0 0.0
    %143 = vmatpush.msra.mxu0 0.0
    %144 = vmatpush.msra.mxu0 %v70
    %145 = vmatpush.msra.mxu0 %v68
    %146 = vmatmul.f32.gmra.mxu0 %v103
    %v147 = vpop.f32.mrf.mxu0
    %v148 = vadd.f32 %v74, %v147
    %149 = vmatmul.f32.gmra.mxu0 %v105
    %v150 = vpop.f32.mrf.mxu0
    %v151 = vadd.f32 %v74, %v150
    %152 = vdwg.mxu0
    %v157 = vrot.slane %v148, 6
    %v158 = vrot.slane %v151, 6
    %vm159 = vcmask 1041408
    %v160 = vsel %vm159, %v125, %v157
    %vm161 = vcmask 1043458
    %v162 = vsel %vm161, %v125, %v157
    %v163 = vrot.slane %v162, 2
    %vm164 = vcmask 1045508
    %v165 = vsel %vm164, %v125, %v157
    %v166 = vrot.slane %v165, 4
    %vm167 = vcmask 1045504
    %v168 = vsel %vm167, %v157, %v125
    %v169 = vrot.slane %v168, 6
    %v170 = vsel %vm159, %v128, %v158
    %v171 = vsel %vm161, %v128, %v158
    %v172 = vrot.slane %v171, 2
    %v173 = vsel %vm164, %v128, %v158
    %v174 = vrot.slane %v173, 4
    %v175 = vsel %vm167, %v158, %v128
    %v176 = vrot.slane %v175, 6
    %185 = vst [vmem:[#allocation2] sm:$0xf] %v160
    %186 = vst [vmem:[#allocation2 + $0x4] sm:$0xf] %v163
    %187 = vst [vmem:[#allocation2 + $0x8] sm:$0xf] %v166
    %188 = vst [vmem:[#allocation2 + $0xc] sm:$0xf] %v169
    %189 = vst [vmem:[#allocation2 + $0x10] sm:$0xf] %v170
    %190 = vst [vmem:[#allocation2 + $0x14] sm:$0xf] %v172
    %191 = vst [vmem:[#allocation2 + $0x18] sm:$0xf] %v174
    %192 = vst [vmem:[#allocation2 + $0x1c] sm:$0xf] %v176
    %v193 = vld [vmem:[#allocation2] sm:$0x3]
    %s194 = scalar_lea.vmem [#allocation2], 28
    %v195 = vld [vmem:[%s194 + $0x2] sm:$0x3]
    %vm196 = vcmask 523264
    %v198 = vsel %vm196, 0.0, 0
    %200 = vmatpush.msra.mxu0 0.0
    %201 = vmatpush.msra.mxu0 0.0
    %202 = vmatpush.msra.mxu0 0.0
    %203 = vmatpush.msra.mxu0 0.0
    %204 = vmatpush.msra.mxu0 0.0
    %205 = vmatpush.msra.mxu0 0.0
    %206 = vmatpush.msra.mxu0 0.0
    %207 = vmatpush.msra.mxu0 0.0
    %208 = vmatpush.msra.mxu0 %v57
    %209 = vmatpush.msra.mxu0 %v55
    %210 = vmatpush.msra.mxu0 %v53
    %211 = vmatpush.msra.mxu0 %v51
    %212 = vmatpush.msra.mxu0 %v49
    %213 = vmatpush.msra.mxu0 %v47
    %214 = vmatpush.msra.mxu0 %v45
    %215 = vmatpush.msra.mxu0 %v43
    %216 = vmatmul.f32.gmra.mxu0 %v198
    %v217 = vpop.f32.mrf.mxu0
    %v218 = vadd.f32 %v193, %v217
    %219 = vdwg.mxu0
    %220 = vmatpush.msra.mxu0 0.0
    %221 = vmatpush.msra.mxu0 0.0
    %222 = vmatpush.msra.mxu0 0.0
    %223 = vmatpush.msra.mxu0 0.0
    %224 = vmatpush.msra.mxu0 0.0
    %225 = vmatpush.msra.mxu0 0.0
    %226 = vmatpush.msra.mxu0 0.0
    %227 = vmatpush.msra.mxu0 0.0
    %228 = vmatpush.msra.mxu0 %v58
    %229 = vmatpush.msra.mxu0 %v56
    %230 = vmatpush.msra.mxu0 %v54
    %231 = vmatpush.msra.mxu0 %v52
    %232 = vmatpush.msra.mxu0 %v50
    %233 = vmatpush.msra.mxu0 %v48
    %234 = vmatpush.msra.mxu0 %v46
    %235 = vmatpush.msra.mxu0 %v44
    %236 = vmatmul.f32.gmra.mxu0 %v198
    %v237 = vpop.f32.mrf.mxu0
    %v238 = vadd.f32 %v195, %v237
    %239 = vdwg.mxu0
    %v240 = vtanh.pop %v218
    %v241 = vtanh.pop %v238
    %v242 = vadd.f32 %v240, 1.0
    %v243 = vadd.f32 %v241, 1.0
    %v244 = vmul.f32 %v242, 0.5
    %v245 = vmul.f32 %v243, 0.5
    %v246 = vmul.f32 %v244, 0.0
    %248 = vrot.lane.b32.xlu0 %v240, 64
    %v249 = vpop.permute.xlu0 %248
    %v251 = vmul.f32 %v244, %v249
    %253 = vrot.lane.b32.xlu0 %v251, 32
    %v254 = vpop.permute.xlu0 %253
    %v256 = vadd.f32 %v246, %v254
    %v257 = vmul.f32 %v245, 0.0
    %259 = vrot.lane.b32.xlu0 %v241, 64
    %v260 = vpop.permute.xlu0 %259
    %v262 = vmul.f32 %v245, %v260
    %264 = vrot.lane.b32.xlu0 %v262, 32
    %v265 = vpop.permute.xlu0 %264
    %v267 = vadd.f32 %v257, %v265
    %v268 = vtanh.pop %v256
    %270 = vrot.lane.b32.xlu0 %v268, 64
    %v271 = vpop.permute.xlu0 %270
    %v273 = vmul.f32 %v244, %v271
    %v274 = vtanh.pop %v267
    %276 = vrot.lane.b32.xlu0 %v274, 64
    %v277 = vpop.permute.xlu0 %276
    %v279 = vmul.f32 %v245, %v277
    %v280 = vtanh.pop %v273
    %282 = vrot.lane.b32.xlu0 %v280, 32
    %v283 = vpop.permute.xlu0 %282
    %vm285 = vcmask 254976
    %286 = vst.msk [vmem:[#allocation6] sm:$0x3] %vm285, %v283
    %v287 = vtanh.pop %v279
    %289 = vrot.lane.b32.xlu0 %v287, 64
    %v290 = vpop.permute.xlu0 %289
    %s292 = scalar_lea.vmem [#allocation6], 14
    %vm293 = vcmask 517376
    %294 = vst.msk [vmem:[%s292] sm:$0x3] %vm293, %v290
    %296 = vrot.lane.b32.xlu0 %v273, 32
    %v297 = vpop.permute.xlu0 %296
    %300 = vrot.lane.b32.xlu0 %v279, 64
    %v301 = vpop.permute.xlu0 %300
    %vm303 = vcmask 261120
    %v304 = vsel %vm303, %v297, %v301
    %s305 = scalar_lea.vmem [#allocation2], 4
    %v306 = vld [vmem:[%s305] sm:$0x3]
    %s307 = scalar_lea.vmem [#allocation2], 24
    %v308 = vld [vmem:[%s307 + $0x2] sm:$0x3]
    %v310 = vsel %vm196, %v304, 0
    %312 = vmatpush.msra.mxu0 0.0
    %313 = vmatpush.msra.mxu0 0.0
    %314 = vmatpush.msra.mxu0 0.0
    %315 = vmatpush.msra.mxu0 0.0
    %316 = vmatpush.msra.mxu0 0.0
    %317 = vmatpush.msra.mxu0 0.0
    %318 = vmatpush.msra.mxu0 0.0
    %319 = vmatpush.msra.mxu0 0.0
    %320 = vmatpush.msra.mxu0 %v57
    %321 = vmatpush.msra.mxu0 %v55
    %322 = vmatpush.msra.mxu0 %v53
    %323 = vmatpush.msra.mxu0 %v51
    %324 = vmatpush.msra.mxu0 %v49
    %325 = vmatpush.msra.mxu0 %v47
    %326 = vmatpush.msra.mxu0 %v45
    %327 = vmatpush.msra.mxu0 %v43
    %328 = vmatmul.f32.gmra.mxu0 %v310
    %v329 = vpop.f32.mrf.mxu0
    %v330 = vadd.f32 %v306, %v329
    %331 = vdwg.mxu0
    %332 = vmatpush.msra.mxu0 0.0
    %333 = vmatpush.msra.mxu0 0.0
    %334 = vmatpush.msra.mxu0 0.0
    %335 = vmatpush.msra.mxu0 0.0
    %336 = vmatpush.msra.mxu0 0.0
    %337 = vmatpush.msra.mxu0 0.0
    %338 = vmatpush.msra.mxu0 0.0
    %339 = vmatpush.msra.mxu0 0.0
    %340 = vmatpush.msra.mxu0 %v58
    %341 = vmatpush.msra.mxu0 %v56
    %342 = vmatpush.msra.mxu0 %v54
    %343 = vmatpush.msra.mxu0 %v52
    %344 = vmatpush.msra.mxu0 %v50
    %345 = vmatpush.msra.mxu0 %v48
    %346 = vmatpush.msra.mxu0 %v46
    %347 = vmatpush.msra.mxu0 %v44
    %348 = vmatmul.f32.gmra.mxu0 %v310
    %v349 = vpop.f32.mrf.mxu0
    %v350 = vadd.f32 %v308, %v349
    %351 = vdwg.mxu0
    %v352 = vtanh.pop %v330
    %v353 = vtanh.pop %v350
    %v354 = vadd.f32 %v352, 1.0
    %v355 = vadd.f32 %v353, 1.0
    %v356 = vmul.f32 %v354, 0.5
    %v357 = vmul.f32 %v355, 0.5
    %v358 = vmul.f32 %v356, %v256
    %360 = vrot.lane.b32.xlu0 %v352, 64
    %v361 = vpop.permute.xlu0 %360
    %v363 = vmul.f32 %v356, %v361
    %365 = vrot.lane.b32.xlu0 %v363, 32
    %v366 = vpop.permute.xlu0 %365
    %v368 = vadd.f32 %v358, %v366
    %v369 = vmul.f32 %v357, %v267
    %371 = vrot.lane.b32.xlu0 %v353, 64
    %v372 = vpop.permute.xlu0 %371
    %v374 = vmul.f32 %v357, %v372
    %376 = vrot.lane.b32.xlu0 %v374, 32
    %v377 = vpop.permute.xlu0 %376
    %v379 = vadd.f32 %v369, %v377
    %v380 = vtanh.pop %v368
    %382 = vrot.lane.b32.xlu0 %v380, 64
    %v383 = vpop.permute.xlu0 %382
    %v385 = vmul.f32 %v356, %v383
    %v386 = vtanh.pop %v379
    %388 = vrot.lane.b32.xlu0 %v386, 64
    %v389 = vpop.permute.xlu0 %388
    %v391 = vmul.f32 %v357, %v389
    %v392 = vtanh.pop %v385
    %394 = vrot.lane.b32.xlu0 %v392, 32
    %v395 = vpop.permute.xlu0 %394
    %s397 = scalar_lea.vmem [#allocation6], 2
    %398 = vst.msk [vmem:[%s397] sm:$0x3] %vm285, %v395
    %v399 = vtanh.pop %v391
    %401 = vrot.lane.b32.xlu0 %v399, 64
    %v402 = vpop.permute.xlu0 %401
    %s404 = scalar_lea.vmem [#allocation6], 12
    %405 = vst.msk [vmem:[%s404] sm:$0x3] %vm293, %v402
    %407 = vrot.lane.b32.xlu0 %v385, 32
    %v408 = vpop.permute.xlu0 %407
    %411 = vrot.lane.b32.xlu0 %v391, 64
    %v412 = vpop.permute.xlu0 %411
    %v414 = vsel %vm303, %v408, %v412
    %s415 = scalar_lea.vmem [#allocation2], 8
    %v416 = vld [vmem:[%s415] sm:$0x3]
    %s417 = scalar_lea.vmem [#allocation2], 20
    %v418 = vld [vmem:[%s417 + $0x2] sm:$0x3]
    %v420 = vsel %vm196, %v414, 0
    %422 = vmatpush.msra.mxu0 0.0
    %423 = vmatpush.msra.mxu0 0.0
    %424 = vmatpush.msra.mxu0 0.0
    %425 = vmatpush.msra.mxu0 0.0
    %426 = vmatpush.msra.mxu0 0.0
    %427 = vmatpush.msra.mxu0 0.0
    %428 = vmatpush.msra.mxu0 0.0
    %429 = vmatpush.msra.mxu0 0.0
    %430 = vmatpush.msra.mxu0 %v57
    %431 = vmatpush.msra.mxu0 %v55
    %432 = vmatpush.msra.mxu0 %v53
    %433 = vmatpush.msra.mxu0 %v51
    %434 = vmatpush.msra.mxu0 %v49
    %435 = vmatpush.msra.mxu0 %v47
    %436 = vmatpush.msra.mxu0 %v45
    %437 = vmatpush.msra.mxu0 %v43
    %438 = vmatmul.f32.gmra.mxu0 %v420
    %v439 = vpop.f32.mrf.mxu0
    %v440 = vadd.f32 %v416, %v439
    %441 = vdwg.mxu0
    %442 = vmatpush.msra.mxu0 0.0
    %443 = vmatpush.msra.mxu0 0.0
    %444 = vmatpush.msra.mxu0 0.0
    %445 = vmatpush.msra.mxu0 0.0
    %446 = vmatpush.msra.mxu0 0.0
    %447 = vmatpush.msra.mxu0 0.0
    %448 = vmatpush.msra.mxu0 0.0
    %449 = vmatpush.msra.mxu0 0.0
    %450 = vmatpush.msra.mxu0 %v58
    %451 = vmatpush.msra.mxu0 %v56
    %452 = vmatpush.msra.mxu0 %v54
    %453 = vmatpush.msra.mxu0 %v52
    %454 = vmatpush.msra.mxu0 %v50
    %455 = vmatpush.msra.mxu0 %v48
    %456 = vmatpush.msra.mxu0 %v46
    %457 = vmatpush.msra.mxu0 %v44
    %458 = vmatmul.f32.gmra.mxu0 %v420
    %v459 = vpop.f32.mrf.mxu0
    %v460 = vadd.f32 %v418, %v459
    %461 = vdwg.mxu0
    %v462 = vtanh.pop %v440
    %v463 = vtanh.pop %v460
    %v464 = vadd.f32 %v462, 1.0
    %v465 = vadd.f32 %v463, 1.0
    %v466 = vmul.f32 %v464, 0.5
    %v467 = vmul.f32 %v465, 0.5
    %v468 = vmul.f32 %v466, %v368
    %470 = vrot.lane.b32.xlu0 %v462, 64
    %v471 = vpop.permute.xlu0 %470
    %v473 = vmul.f32 %v466, %v471
    %475 = vrot.lane.b32.xlu0 %v473, 32
    %v476 = vpop.permute.xlu0 %475
    %v478 = vadd.f32 %v468, %v476
    %v479 = vmul.f32 %v467, %v379
    %481 = vrot.lane.b32.xlu0 %v463, 64
    %v482 = vpop.permute.xlu0 %481
    %v484 = vmul.f32 %v467, %v482
    %486 = vrot.lane.b32.xlu0 %v484, 32
    %v487 = vpop.permute.xlu0 %486
    %v489 = vadd.f32 %v479, %v487
    %v490 = vtanh.pop %v478
    %492 = vrot.lane.b32.xlu0 %v490, 64
    %v493 = vpop.permute.xlu0 %492
    %v495 = vmul.f32 %v466, %v493
    %v496 = vtanh.pop %v489
    %498 = vrot.lane.b32.xlu0 %v496, 64
    %v499 = vpop.permute.xlu0 %498
    %v501 = vmul.f32 %v467, %v499
    %v502 = vtanh.pop %v495
    %504 = vrot.lane.b32.xlu0 %v502, 32
    %v505 = vpop.permute.xlu0 %504
    %s507 = scalar_lea.vmem [#allocation6], 4
    %508 = vst.msk [vmem:[%s507] sm:$0x3] %vm285, %v505
    %v509 = vtanh.pop %v501
    %511 = vrot.lane.b32.xlu0 %v509, 64
    %v512 = vpop.permute.xlu0 %511
    %s514 = scalar_lea.vmem [#allocation6], 10
    %515 = vst.msk [vmem:[%s514] sm:$0x3] %vm293, %v512
    %517 = vrot.lane.b32.xlu0 %v495, 32
    %v518 = vpop.permute.xlu0 %517
    %521 = vrot.lane.b32.xlu0 %v501, 64
    %v522 = vpop.permute.xlu0 %521
    %v524 = vsel %vm303, %v518, %v522
    %s525 = scalar_lea.vmem [#allocation2], 12
    %v526 = vld [vmem:[%s525] sm:$0x3]
    %s527 = scalar_lea.vmem [#allocation2], 16
    %v528 = vld [vmem:[%s527 + $0x2] sm:$0x3]
    %v530 = vsel %vm196, %v524, 0
    %532 = vmatpush.msra.mxu0 0.0
    %533 = vmatpush.msra.mxu0 0.0
    %534 = vmatpush.msra.mxu0 0.0
    %535 = vmatpush.msra.mxu0 0.0
    %536 = vmatpush.msra.mxu0 0.0
    %537 = vmatpush.msra.mxu0 0.0
    %538 = vmatpush.msra.mxu0 0.0
    %539 = vmatpush.msra.mxu0 0.0
    %540 = vmatpush.msra.mxu0 %v57
    %541 = vmatpush.msra.mxu0 %v55
    %542 = vmatpush.msra.mxu0 %v53
    %543 = vmatpush.msra.mxu0 %v51
    %544 = vmatpush.msra.mxu0 %v49
    %545 = vmatpush.msra.mxu0 %v47
    %546 = vmatpush.msra.mxu0 %v45
    %547 = vmatpush.msra.mxu0 %v43
    %548 = vmatmul.f32.gmra.mxu0 %v530
    %v549 = vpop.f32.mrf.mxu0
    %v550 = vadd.f32 %v526, %v549
    %551 = vdwg.mxu0
    %552 = vmatpush.msra.mxu0 0.0
    %553 = vmatpush.msra.mxu0 0.0
    %554 = vmatpush.msra.mxu0 0.0
    %555 = vmatpush.msra.mxu0 0.0
    %556 = vmatpush.msra.mxu0 0.0
    %557 = vmatpush.msra.mxu0 0.0
    %558 = vmatpush.msra.mxu0 0.0
    %559 = vmatpush.msra.mxu0 0.0
    %560 = vmatpush.msra.mxu0 %v58
    %561 = vmatpush.msra.mxu0 %v56
    %562 = vmatpush.msra.mxu0 %v54
    %563 = vmatpush.msra.mxu0 %v52
    %564 = vmatpush.msra.mxu0 %v50
    %565 = vmatpush.msra.mxu0 %v48
    %566 = vmatpush.msra.mxu0 %v46
    %567 = vmatpush.msra.mxu0 %v44
    %568 = vmatmul.f32.gmra.mxu0 %v530
    %v569 = vpop.f32.mrf.mxu0
    %v570 = vadd.f32 %v528, %v569
    %571 = vdwg.mxu0
    %v572 = vtanh.pop %v550
    %v573 = vtanh.pop %v570
    %v574 = vadd.f32 %v572, 1.0
    %v575 = vadd.f32 %v573, 1.0
    %v576 = vmul.f32 %v574, 0.5
    %v577 = vmul.f32 %v575, 0.5
    %v578 = vmul.f32 %v576, %v478
    %580 = vrot.lane.b32.xlu0 %v572, 64
    %v581 = vpop.permute.xlu0 %580
    %v583 = vmul.f32 %v576, %v581
    %585 = vrot.lane.b32.xlu0 %v583, 32
    %v586 = vpop.permute.xlu0 %585
    %v588 = vadd.f32 %v578, %v586
    %v589 = vmul.f32 %v577, %v489
    %591 = vrot.lane.b32.xlu0 %v573, 64
    %v592 = vpop.permute.xlu0 %591
    %v594 = vmul.f32 %v577, %v592
    %596 = vrot.lane.b32.xlu0 %v594, 32
    %v597 = vpop.permute.xlu0 %596
    %v599 = vadd.f32 %v589, %v597
    %v600 = vtanh.pop %v588
    %602 = vrot.lane.b32.xlu0 %v600, 64
    %v603 = vpop.permute.xlu0 %602
    %v605 = vmul.f32 %v576, %v603
    %v606 = vtanh.pop %v599
    %608 = vrot.lane.b32.xlu0 %v606, 64
    %v609 = vpop.permute.xlu0 %608
    %v611 = vmul.f32 %v577, %v609
    %v612 = vtanh.pop %v605
    %614 = vrot.lane.b32.xlu0 %v612, 32
    %v615 = vpop.permute.xlu0 %614
    %s617 = scalar_lea.vmem [#allocation6], 6
    %618 = vst.msk [vmem:[%s617] sm:$0x3] %vm285, %v615
    %v619 = vtanh.pop %v611
    %621 = vrot.lane.b32.xlu0 %v619, 64
    %v622 = vpop.permute.xlu0 %621
    %s624 = scalar_lea.vmem [#allocation6], 8
    %625 = vst.msk [vmem:[%s624] sm:$0x3] %vm293, %v622
    %627 = vrot.lane.b32.xlu0 %v605, 32
    %v628 = vpop.permute.xlu0 %627
    %631 = vrot.lane.b32.xlu0 %v611, 64
    %v632 = vpop.permute.xlu0 %631
    %v634 = vsel %vm303, %v628, %v632
    %v635 = vld [vmem:[%s527] sm:$0x3]
    %v636 = vld [vmem:[%s525 + $0x2] sm:$0x3]
    %v638 = vsel %vm196, %v634, 0
    %640 = vmatpush.msra.mxu0 0.0
    %641 = vmatpush.msra.mxu0 0.0
    %642 = vmatpush.msra.mxu0 0.0
    %643 = vmatpush.msra.mxu0 0.0
    %644 = vmatpush.msra.mxu0 0.0
    %645 = vmatpush.msra.mxu0 0.0
    %646 = vmatpush.msra.mxu0 0.0
    %647 = vmatpush.msra.mxu0 0.0
    %648 = vmatpush.msra.mxu0 %v57
    %649 = vmatpush.msra.mxu0 %v55
    %650 = vmatpush.msra.mxu0 %v53
    %651 = vmatpush.msra.mxu0 %v51
    %652 = vmatpush.msra.mxu0 %v49
    %653 = vmatpush.msra.mxu0 %v47
    %654 = vmatpush.msra.mxu0 %v45
    %655 = vmatpush.msra.mxu0 %v43
    %656 = vmatmul.f32.gmra.mxu0 %v638
    %v657 = vpop.f32.mrf.mxu0
    %v658 = vadd.f32 %v635, %v657
    %659 = vdwg.mxu0
    %660 = vmatpush.msra.mxu0 0.0
    %661 = vmatpush.msra.mxu0 0.0
    %662 = vmatpush.msra.mxu0 0.0
    %663 = vmatpush.msra.mxu0 0.0
    %664 = vmatpush.msra.mxu0 0.0
    %665 = vmatpush.msra.mxu0 0.0
    %666 = vmatpush.msra.mxu0 0.0
    %667 = vmatpush.msra.mxu0 0.0
    %668 = vmatpush.msra.mxu0 %v58
    %669 = vmatpush.msra.mxu0 %v56
    %670 = vmatpush.msra.mxu0 %v54
    %671 = vmatpush.msra.mxu0 %v52
    %672 = vmatpush.msra.mxu0 %v50
    %673 = vmatpush.msra.mxu0 %v48
    %674 = vmatpush.msra.mxu0 %v46
    %675 = vmatpush.msra.mxu0 %v44
    %676 = vmatmul.f32.gmra.mxu0 %v638
    %v677 = vpop.f32.mrf.mxu0
    %v678 = vadd.f32 %v636, %v677
    %679 = vdwg.mxu0
    %v680 = vtanh.pop %v658
    %v681 = vtanh.pop %v678
    %v682 = vadd.f32 %v680, 1.0
    %v683 = vadd.f32 %v681, 1.0
    %v684 = vmul.f32 %v682, 0.5
    %v685 = vmul.f32 %v683, 0.5
    %v686 = vmul.f32 %v684, %v588
    %688 = vrot.lane.b32.xlu0 %v680, 64
    %v689 = vpop.permute.xlu0 %688
    %v691 = vmul.f32 %v684, %v689
    %693 = vrot.lane.b32.xlu0 %v691, 32
    %v694 = vpop.permute.xlu0 %693
    %v696 = vadd.f32 %v686, %v694
    %v697 = vmul.f32 %v685, %v599
    %699 = vrot.lane.b32.xlu0 %v681, 64
    %v700 = vpop.permute.xlu0 %699
    %v702 = vmul.f32 %v685, %v700
    %704 = vrot.lane.b32.xlu0 %v702, 32
    %v705 = vpop.permute.xlu0 %704
    %v707 = vadd.f32 %v697, %v705
    %v708 = vtanh.pop %v696
    %710 = vrot.lane.b32.xlu0 %v708, 64
    %v711 = vpop.permute.xlu0 %710
    %v713 = vmul.f32 %v684, %v711
    %v714 = vtanh.pop %v707
    %716 = vrot.lane.b32.xlu0 %v714, 64
    %v717 = vpop.permute.xlu0 %716
    %v719 = vmul.f32 %v685, %v717
    %v720 = vtanh.pop %v713
    %722 = vrot.lane.b32.xlu0 %v720, 32
    %v723 = vpop.permute.xlu0 %722
    %725 = vst.msk [vmem:[%s624] sm:$0x3] %vm285, %v723
    %v726 = vtanh.pop %v719
    %728 = vrot.lane.b32.xlu0 %v726, 64
    %v729 = vpop.permute.xlu0 %728
    %731 = vst.msk [vmem:[%s617] sm:$0x3] %vm293, %v729
    %733 = vrot.lane.b32.xlu0 %v713, 32
    %v734 = vpop.permute.xlu0 %733
    %737 = vrot.lane.b32.xlu0 %v719, 64
    %v738 = vpop.permute.xlu0 %737
    %v740 = vsel %vm303, %v734, %v738
    %v741 = vld [vmem:[%s417] sm:$0x3]
    %v742 = vld [vmem:[%s415 + $0x2] sm:$0x3]
    %v744 = vsel %vm196, %v740, 0
    %746 = vmatpush.msra.mxu0 0.0
    %747 = vmatpush.msra.mxu0 0.0
    %748 = vmatpush.msra.mxu0 0.0
    %749 = vmatpush.msra.mxu0 0.0
    %750 = vmatpush.msra.mxu0 0.0
    %751 = vmatpush.msra.mxu0 0.0
    %752 = vmatpush.msra.mxu0 0.0
    %753 = vmatpush.msra.mxu0 0.0
    %754 = vmatpush.msra.mxu0 %v57
    %755 = vmatpush.msra.mxu0 %v55
    %756 = vmatpush.msra.mxu0 %v53
    %757 = vmatpush.msra.mxu0 %v51
    %758 = vmatpush.msra.mxu0 %v49
    %759 = vmatpush.msra.mxu0 %v47
    %760 = vmatpush.msra.mxu0 %v45
    %761 = vmatpush.msra.mxu0 %v43
    %762 = vmatmul.f32.gmra.mxu0 %v744
    %v763 = vpop.f32.mrf.mxu0
    %v764 = vadd.f32 %v741, %v763
    %765 = vdwg.mxu0
    %766 = vmatpush.msra.mxu0 0.0
    %767 = vmatpush.msra.mxu0 0.0
    %768 = vmatpush.msra.mxu0 0.0
    %769 = vmatpush.msra.mxu0 0.0
    %770 = vmatpush.msra.mxu0 0.0
    %771 = vmatpush.msra.mxu0 0.0
    %772 = vmatpush.msra.mxu0 0.0
    %773 = vmatpush.msra.mxu0 0.0
    %774 = vmatpush.msra.mxu0 %v58
    %775 = vmatpush.msra.mxu0 %v56
    %776 = vmatpush.msra.mxu0 %v54
    %777 = vmatpush.msra.mxu0 %v52
    %778 = vmatpush.msra.mxu0 %v50
    %779 = vmatpush.msra.mxu0 %v48
    %780 = vmatpush.msra.mxu0 %v46
    %781 = vmatpush.msra.mxu0 %v44
    %782 = vmatmul.f32.gmra.mxu0 %v744
    %v783 = vpop.f32.mrf.mxu0
    %v784 = vadd.f32 %v742, %v783
    %785 = vdwg.mxu0
    %v786 = vtanh.pop %v764
    %v787 = vtanh.pop %v784
    %v788 = vadd.f32 %v786, 1.0
    %v789 = vadd.f32 %v787, 1.0
    %v790 = vmul.f32 %v788, 0.5
    %v791 = vmul.f32 %v789, 0.5
    %v792 = vmul.f32 %v790, %v696
    %794 = vrot.lane.b32.xlu0 %v786, 64
    %v795 = vpop.permute.xlu0 %794
    %v797 = vmul.f32 %v790, %v795
    %799 = vrot.lane.b32.xlu0 %v797, 32
    %v800 = vpop.permute.xlu0 %799
    %v802 = vadd.f32 %v792, %v800
    %v803 = vmul.f32 %v791, %v707
    %805 = vrot.lane.b32.xlu0 %v787, 64
    %v806 = vpop.permute.xlu0 %805
    %v808 = vmul.f32 %v791, %v806
    %810 = vrot.lane.b32.xlu0 %v808, 32
    %v811 = vpop.permute.xlu0 %810
    %v813 = vadd.f32 %v803, %v811
    %v814 = vtanh.pop %v802
    %816 = vrot.lane.b32.xlu0 %v814, 64
    %v817 = vpop.permute.xlu0 %816
    %v819 = vmul.f32 %v790, %v817
    %v820 = vtanh.pop %v813
    %822 = vrot.lane.b32.xlu0 %v820, 64
    %v823 = vpop.permute.xlu0 %822
    %v825 = vmul.f32 %v791, %v823
    %v826 = vtanh.pop %v819
    %828 = vrot.lane.b32.xlu0 %v826, 32
    %v829 = vpop.permute.xlu0 %828
    %831 = vst.msk [vmem:[%s514] sm:$0x3] %vm285, %v829
    %v832 = vtanh.pop %v825
    %834 = vrot.lane.b32.xlu0 %v832, 64
    %v835 = vpop.permute.xlu0 %834
    %837 = vst.msk [vmem:[%s507] sm:$0x3] %vm293, %v835
    %839 = vrot.lane.b32.xlu0 %v819, 32
    %v840 = vpop.permute.xlu0 %839
    %843 = vrot.lane.b32.xlu0 %v825, 64
    %v844 = vpop.permute.xlu0 %843
    %v846 = vsel %vm303, %v840, %v844
    %v847 = vld [vmem:[%s307] sm:$0x3]
    %v848 = vld [vmem:[%s305 + $0x2] sm:$0x3]
    %v850 = vsel %vm196, %v846, 0
    %852 = vmatpush.msra.mxu0 0.0
    %853 = vmatpush.msra.mxu0 0.0
    %854 = vmatpush.msra.mxu0 0.0
    %855 = vmatpush.msra.mxu0 0.0
    %856 = vmatpush.msra.mxu0 0.0
    %857 = vmatpush.msra.mxu0 0.0
    %858 = vmatpush.msra.mxu0 0.0
    %859 = vmatpush.msra.mxu0 0.0
    %860 = vmatpush.msra.mxu0 %v57
    %861 = vmatpush.msra.mxu0 %v55
    %862 = vmatpush.msra.mxu0 %v53
    %863 = vmatpush.msra.mxu0 %v51
    %864 = vmatpush.msra.mxu0 %v49
    %865 = vmatpush.msra.mxu0 %v47
    %866 = vmatpush.msra.mxu0 %v45
    %867 = vmatpush.msra.mxu0 %v43
    %868 = vmatmul.f32.gmra.mxu0 %v850
    %v869 = vpop.f32.mrf.mxu0
    %v870 = vadd.f32 %v847, %v869
    %871 = vdwg.mxu0
    %872 = vmatpush.msra.mxu0 0.0
    %873 = vmatpush.msra.mxu0 0.0
    %874 = vmatpush.msra.mxu0 0.0
    %875 = vmatpush.msra.mxu0 0.0
    %876 = vmatpush.msra.mxu0 0.0
    %877 = vmatpush.msra.mxu0 0.0
    %878 = vmatpush.msra.mxu0 0.0
    %879 = vmatpush.msra.mxu0 0.0
    %880 = vmatpush.msra.mxu0 %v58
    %881 = vmatpush.msra.mxu0 %v56
    %882 = vmatpush.msra.mxu0 %v54
    %883 = vmatpush.msra.mxu0 %v52
    %884 = vmatpush.msra.mxu0 %v50
    %885 = vmatpush.msra.mxu0 %v48
    %886 = vmatpush.msra.mxu0 %v46
    %887 = vmatpush.msra.mxu0 %v44
    %888 = vmatmul.f32.gmra.mxu0 %v850
    %v889 = vpop.f32.mrf.mxu0
    %v890 = vadd.f32 %v848, %v889
    %891 = vdwg.mxu0
    %v892 = vtanh.pop %v870
    %v893 = vtanh.pop %v890
    %v894 = vadd.f32 %v892, 1.0
    %v895 = vadd.f32 %v893, 1.0
    %v896 = vmul.f32 %v894, 0.5
    %v897 = vmul.f32 %v895, 0.5
    %v898 = vmul.f32 %v896, %v802
    %900 = vrot.lane.b32.xlu0 %v892, 64
    %v901 = vpop.permute.xlu0 %900
    %v903 = vmul.f32 %v896, %v901
    %905 = vrot.lane.b32.xlu0 %v903, 32
    %v906 = vpop.permute.xlu0 %905
    %v908 = vadd.f32 %v898, %v906
    %v909 = vmul.f32 %v897, %v813
    %911 = vrot.lane.b32.xlu0 %v893, 64
    %v912 = vpop.permute.xlu0 %911
    %v914 = vmul.f32 %v897, %v912
    %916 = vrot.lane.b32.xlu0 %v914, 32
    %v917 = vpop.permute.xlu0 %916
    %v919 = vadd.f32 %v909, %v917
    %v920 = vtanh.pop %v908
    %922 = vrot.lane.b32.xlu0 %v920, 64
    %v923 = vpop.permute.xlu0 %922
    %v925 = vmul.f32 %v896, %v923
    %v926 = vtanh.pop %v919
    %928 = vrot.lane.b32.xlu0 %v926, 64
    %v929 = vpop.permute.xlu0 %928
    %v931 = vmul.f32 %v897, %v929
    %v932 = vtanh.pop %v925
    %934 = vrot.lane.b32.xlu0 %v932, 32
    %v935 = vpop.permute.xlu0 %934
    %937 = vst.msk [vmem:[%s404] sm:$0x3] %vm285, %v935
    %v938 = vtanh.pop %v931
    %940 = vrot.lane.b32.xlu0 %v938, 64
    %v941 = vpop.permute.xlu0 %940
    %943 = vst.msk [vmem:[%s397] sm:$0x3] %vm293, %v941
    %945 = vrot.lane.b32.xlu0 %v925, 32
    %v946 = vpop.permute.xlu0 %945
    %949 = vrot.lane.b32.xlu0 %v931, 64
    %v950 = vpop.permute.xlu0 %949
    %v952 = vsel %vm303, %v946, %v950
    %v953 = vld [vmem:[%s194] sm:$0x3]
    %v954 = vld [vmem:[#allocation2 + $0x2] sm:$0x3]
    %v956 = vsel %vm196, %v952, 0
    %958 = vmatpush.msra.mxu0 0.0
    %959 = vmatpush.msra.mxu0 0.0
    %960 = vmatpush.msra.mxu0 0.0
    %961 = vmatpush.msra.mxu0 0.0
    %962 = vmatpush.msra.mxu0 0.0
    %963 = vmatpush.msra.mxu0 0.0
    %964 = vmatpush.msra.mxu0 0.0
    %965 = vmatpush.msra.mxu0 0.0
    %966 = vmatpush.msra.mxu0 %v57
    %967 = vmatpush.msra.mxu0 %v55
    %968 = vmatpush.msra.mxu0 %v53
    %969 = vmatpush.msra.mxu0 %v51
    %970 = vmatpush.msra.mxu0 %v49
    %971 = vmatpush.msra.mxu0 %v47
    %972 = vmatpush.msra.mxu0 %v45
    %973 = vmatpush.msra.mxu0 %v43
    %974 = vmatmul.f32.gmra.mxu0 %v956
    %v975 = vpop.f32.mrf.mxu0
    %v976 = vadd.f32 %v953, %v975
    %977 = vdwg.mxu0
    %978 = vmatpush.msra.mxu0 0.0
    %979 = vmatpush.msra.mxu0 0.0
    %980 = vmatpush.msra.mxu0 0.0
    %981 = vmatpush.msra.mxu0 0.0
    %982 = vmatpush.msra.mxu0 0.0
    %983 = vmatpush.msra.mxu0 0.0
    %984 = vmatpush.msra.mxu0 0.0
    %985 = vmatpush.msra.mxu0 0.0
    %986 = vmatpush.msra.mxu0 %v58
    %987 = vmatpush.msra.mxu0 %v56
    %988 = vmatpush.msra.mxu0 %v54
    %989 = vmatpush.msra.mxu0 %v52
    %990 = vmatpush.msra.mxu0 %v50
    %991 = vmatpush.msra.mxu0 %v48
    %992 = vmatpush.msra.mxu0 %v46
    %993 = vmatpush.msra.mxu0 %v44
    %994 = vmatmul.f32.gmra.mxu0 %v956
    %v995 = vpop.f32.mrf.mxu0
    %v996 = vadd.f32 %v954, %v995
    %997 = vdwg.mxu0
    %v998 = vtanh.pop %v976
    %v999 = vtanh.pop %v996
    %v1000 = vadd.f32 %v998, 1.0
    %v1001 = vadd.f32 %v999, 1.0
    %v1002 = vmul.f32 %v1000, 0.5
    %v1003 = vmul.f32 %v1001, 0.5
    %v1004 = vmul.f32 %v1002, %v908
    %1006 = vrot.lane.b32.xlu0 %v998, 64
    %v1007 = vpop.permute.xlu0 %1006
    %v1009 = vmul.f32 %v1002, %v1007
    %1011 = vrot.lane.b32.xlu0 %v1009, 32
    %v1012 = vpop.permute.xlu0 %1011
    %v1014 = vadd.f32 %v1004, %v1012
    %v1015 = vmul.f32 %v1003, %v919
    %1017 = vrot.lane.b32.xlu0 %v999, 64
    %v1018 = vpop.permute.xlu0 %1017
    %v1020 = vmul.f32 %v1003, %v1018
    %1022 = vrot.lane.b32.xlu0 %v1020, 32
    %v1023 = vpop.permute.xlu0 %1022
    %v1025 = vadd.f32 %v1015, %v1023
    %v1026 = vtanh.pop %v1014
    %1028 = vrot.lane.b32.xlu0 %v1026, 64
    %v1029 = vpop.permute.xlu0 %1028
    %v1031 = vmul.f32 %v1002, %v1029
    %v1032 = vtanh.pop %v1025
    %1034 = vrot.lane.b32.xlu0 %v1032, 64
    %v1035 = vpop.permute.xlu0 %1034
    %v1037 = vmul.f32 %v1003, %v1035
    %v1038 = vtanh.pop %v1031
    %1040 = vrot.lane.b32.xlu0 %v1038, 32
    %v1041 = vpop.permute.xlu0 %1040
    %1043 = vst.msk [vmem:[%s292] sm:$0x3] %vm285, %v1041
    %v1044 = vtanh.pop %v1037
    %1046 = vrot.lane.b32.xlu0 %v1044, 64
    %v1047 = vpop.permute.xlu0 %1046
    %1049 = vst.msk [vmem:[#allocation6] sm:$0x3] %vm293, %v1047
    %v1050 = vld [vmem:[#allocation6] sm:$0x3]
    %v1051 = vld [vmem:[#allocation6 + $0x2] sm:$0x3]
    %v1052 = vld [vmem:[#allocation6 + $0x4] sm:$0x3]
    %v1053 = vld [vmem:[#allocation6 + $0x6] sm:$0x3]
    %v1054 = vld [vmem:[#allocation6 + $0x8] sm:$0x3]
    %v1055 = vld [vmem:[#allocation6 + $0xa] sm:$0x3]
    %v1056 = vld [vmem:[#allocation6 + $0xc] sm:$0x3]
    %v1057 = vld [vmem:[#allocation6 + $0xe] sm:$0x3]
    %v1058 = vld [vmem:[%s4] sm:$0xff]
    %v1059 = vld [vmem:[%s4 + $0x8] sm:$0xff]
    %v1060 = vld [vmem:[%s4 + $0x10] sm:$0xff]
    %v1061 = vld [vmem:[%s4 + $0x18] sm:$0xff]
    %v1062 = vld [vmem:[%s4 + $0x20] sm:$0xff]
    %v1063 = vld [vmem:[%s4 + $0x28] sm:$0xff]
    %v1064 = vld [vmem:[%s4 + $0x30] sm:$0xff]
    %v1065 = vld [vmem:[%s4 + $0x38] sm:$0xff]
    %v1066 = vld [vmem:[%s5] sm:$0x1]
    %v1068 = vperm.slane %v1066, 0
    %1078 = vst [vmem:[#allocation1] ss:$4 sm:$0xff] %v1050
    %s1079 = scalar_lea.vmem [#allocation1], 1
    %1080 = vst [vmem:[%s1079] ss:$4 sm:$0xff] %v1051
    %s1081 = scalar_lea.vmem [#allocation1], 2
    %1082 = vst [vmem:[%s1081] ss:$4 sm:$0xff] %v1052
    %s1083 = scalar_lea.vmem [#allocation1], 3
    %1084 = vst [vmem:[%s1083] ss:$4 sm:$0xff] %v1053
    %s1085 = scalar_lea.vmem [#allocation1], 32
    %1086 = vst [vmem:[%s1085] ss:$4 sm:$0xff] %v1054
    %s1087 = scalar_lea.vmem [#allocation1], 33
    %1088 = vst [vmem:[%s1087] ss:$4 sm:$0xff] %v1055
    %s1089 = scalar_lea.vmem [#allocation1], 34
    %1090 = vst [vmem:[%s1089] ss:$4 sm:$0xff] %v1056
    %s1091 = scalar_lea.vmem [#allocation1], 35
    %1092 = vst [vmem:[%s1091] ss:$4 sm:$0xff] %v1057
    %v1093 = vld.sshfl [vmem:[#allocation1] sm:$0xff pattern:$0x73625140]
    %v1094 = vld.sshfl [vmem:[#allocation1 + $0x20] sm:$0xff pattern:$0x73625140]
    %v1095 = vsel %vm196, %v1093, 0
    %v1097 = vsel %vm196, %v1094, 0
    %1099 = vmatpush.msra.mxu0 0.0
    %1100 = vmatpush.msra.mxu0 0.0
    %1101 = vmatpush.msra.mxu0 0.0
    %1102 = vmatpush.msra.mxu0 0.0
    %1103 = vmatpush.msra.mxu0 0.0
    %1104 = vmatpush.msra.mxu0 0.0
    %1105 = vmatpush.msra.mxu0 0.0
    %1106 = vmatpush.msra.mxu0 0.0
    %1107 = vmatpush.msra.mxu0 %v1065
    %1108 = vmatpush.msra.mxu0 %v1064
    %1109 = vmatpush.msra.mxu0 %v1063
    %1110 = vmatpush.msra.mxu0 %v1062
    %1111 = vmatpush.msra.mxu0 %v1061
    %1112 = vmatpush.msra.mxu0 %v1060
    %1113 = vmatpush.msra.mxu0 %v1059
    %1114 = vmatpush.msra.mxu0 %v1058
    %1115 = vmatmul.f32.gmra.mxu0 %v1095
    %v1116 = vpop.f32.mrf.mxu0
    %v1117 = vadd.f32 %v1068, %v1116
    %1118 = vmatmul.f32.gmra.mxu0 %v1097
    %v1119 = vpop.f32.mrf.mxu0
    %v1120 = vadd.f32 %v1068, %v1119
    %1121 = vdwg.mxu0
    %v1124 = vrot.slane %v1117, 2
    %v1125 = vrot.slane %v1117, 4
    %v1126 = vrot.slane %v1117, 6
    %v1127 = vrot.slane %v1120, 2
    %v1128 = vrot.slane %v1120, 4
    %v1129 = vrot.slane %v1120, 6
    %vm1136 = vcmask 123904
    %1137 = vst.msk [vmem:[#allocation7] sm:$0x3] %vm1136, %v1117
    %1138 = vst.msk [vmem:[#allocation7 + $0x2] sm:$0x3] %vm1136, %v1124
    %1139 = vst.msk [vmem:[#allocation7 + $0x4] sm:$0x3] %vm1136, %v1125
    %1140 = vst.msk [vmem:[#allocation7 + $0x6] sm:$0x3] %vm1136, %v1126
    %1141 = vst.msk [vmem:[#allocation7 + $0x8] sm:$0x3] %vm1136, %v1120
    %1142 = vst.msk [vmem:[#allocation7 + $0xa] sm:$0x3] %vm1136, %v1127
    %1143 = vst.msk [vmem:[#allocation7 + $0xc] sm:$0x3] %vm1136, %v1128
    %1144 = vst.msk [vmem:[#allocation7 + $0xe] sm:$0x3] %vm1136, %v1129
    // Predicated region
    $region30: #{tpu_custom_call.1} parent=1 // pred_check
      _
    $region31: #{tpu_custom_call.1} parent=1 // pred_check_branch
      %1146 = sbr.rel (0) target = $region33
    $region32: #{tpu_custom_call.1} parent=1 // pred_region
      %1148 = vsyncadd [#allocation5], 0
      %s1149 = sshll.u32 [#allocation6], 4
      %s1150 = int_to_ptr.vmem [resolvable:$true] %s1149
      %s1151 = sshll.u32 %s6, 4
      %s1152 = int_to_ptr.hbm [resolvable:$true] %s1151
      %1157 = dma.vmem_to_hbm [thread:$0]  %s1150, 256, %s1152, [#allocation5], 32, 32, 2
    $region33: #{tpu_custom_call.1} parent=1 // pred_fallthru
      _
    // Predicated region
    $region34: #{tpu_custom_call.1} parent=1 // pred_check
      _
    $region35: #{tpu_custom_call.1} parent=1 // pred_check_branch
      %1159 = sbr.rel (0) target = $region37
    $region36: #{tpu_custom_call.1} parent=1 // pred_region
      %1161 = vsyncadd [#allocation8], 0
      %s1162 = sshll.u32 [#allocation7], 4
      %s1163 = int_to_ptr.vmem [resolvable:$true] %s1162
      %s1164 = sshll.u32 %s7, 4
      %s1165 = int_to_ptr.hbm [resolvable:$true] %s1164
      %1170 = dma.vmem_to_hbm [thread:$0]  %s1163, 256, %s1165, [#allocation8], 32, 32, 2
    $region37: #{tpu_custom_call.1} parent=1 // pred_fallthru
      _
    // Predicated region
    $region38: #{tpu_custom_call.1} parent=1 // pred_check
      _
    $region39: #{tpu_custom_call.1} parent=1 // pred_check_branch
      %1172 = sbr.rel (0) target = $region41
    $region40: #{tpu_custom_call.1} parent=1 // pred_region
      %1174 = dma.done [#allocation5], 256
    $region41: #{tpu_custom_call.1} parent=1 // pred_fallthru
      _
    // Predicated region
    $region42: #{tpu_custom_call.1} parent=1 // pred_check
      _
    $region43: #{tpu_custom_call.1} parent=1 // pred_check_branch
      %1176 = sbr.rel (0) target = $region45
    $region44: #{tpu_custom_call.1} parent=1 // pred_region
      %1178 = dma.done [#allocation8], 256
    $region45: #{tpu_custom_call.1} parent=1 // pred_fallthru
      _
    %1179 = vsyncpa [#allocation4], 1
    %1180 = vsyncpa [#allocation5], 1
    %1181 = vsyncpa [#allocation8], 1

</llo_original>
